<compile_context>
chip_gen: v7x
topology: tpu7x:2x2x1
jax: 0.10.0
libtpu: 0.0.40
codegen_flags: <defaults>
</compile_context>

<pallas_src>
import functools

import jax
import jax.numpy as jnp
import numpy as np
from jax import lax
from jax.experimental import pallas as pl
from jax.experimental.pallas import tpu as pltpu

HIDDEN = 256          # GRU hidden dim (fixed by the module)
OUT_DIM = 32          # final Linear output width
OUT_PAD = 128         # lane-dense padded output width (sliced back to 32)
SUBLANE = 8           # batch padded to a full sublane
DEFAULT_TIME_CHUNK = 16


# ---------------------------------------------------------------------------
# Fused kernel (one grid step = one time chunk):
#   chunk input projection -> GRU recurrence (h carried across chunks)
#   -> on the last chunk: 3-layer MLP head + lane-dense store.
# ---------------------------------------------------------------------------
def _fused_kernel(tidx_ref, x_ref, wih_ref, whh_ref, bhh_ref,
                  w1_ref, b1_ref, w2_ref, b2_ref, w3_ref, b3_ref,
                  o_ref, gi_scratch, h_scratch):
    c = pl.program_id(0)
    n_chunks = pl.num_programs(0)
    Tc, Bp, _ = gi_scratch.shape          # chunk length, padded batch, 3H
    H = whh_ref.shape[0]

    @pl.when(c == 0)
    def _init():
        h_scratch[...] = jnp.zeros_like(h_scratch)

    # Hoisted input projection for this chunk: one (Tc*Bp, D+1) @ (D+1, 3H)
    # bf16 matmul; b_ih rides along via the constant-1 lane appended to x.
    proj = jnp.dot(x_ref[...], wih_ref[...],
                   preferred_element_type=jnp.float32)          # (Tc*Bp, 3H) f32
    # Stage in bf16, one tile-aligned (Bp, 3H) slab per timestep (static slices,
    # no dynamic packed-sublane slicing inside the recurrence).
    for tt in range(Tc):
        gi_scratch[tt] = proj[tt * Bp:(tt + 1) * Bp, :].astype(jnp.bfloat16)

    w_hh = whh_ref[...]               # (H, 3H) bf16 — hoisted out of the loop
    b_hh = bhh_ref[...]               # (1, 3H) f32
    t_idx = tidx_ref[...]             # (Bp, 1) int32: (seq_len - 1) per row
    t_base = c * Tc

    def step(t, h):
        gi = gi_scratch[t].astype(jnp.float32)                     # (Bp, 3H)
        gh = jnp.dot(h.astype(jnp.bfloat16), w_hh,
                     preferred_element_type=jnp.float32) + b_hh    # (Bp, 3H) f32
        pre_r = gi[:, 0:H] + gh[:, 0:H]
        pre_z = gi[:, H:2 * H] + gh[:, H:2 * H]
        # sigmoid(x) == 0.5*(1 + tanh(0.5*x)): one EUP pass instead of two.
        r = 0.5 * (1.0 + jnp.tanh(0.5 * pre_r))
        z = 0.5 * (1.0 + jnp.tanh(0.5 * pre_z))
        n = jnp.tanh(gi[:, 2 * H:3 * H] + r * gh[:, 2 * H:3 * H])
        h_new = (1.0 - z) * n + z * h
        # Freeze rows whose (seq_len - 1) timestep has passed: the final h is
        # then exactly out[b, seq_len[b]-1] (the PyTorch gather).
        return jnp.where((t_base + t) <= t_idx, h_new, h)

    h = lax.fori_loop(0, Tc, step, h_scratch[...], unroll=min(int(Tc), 8))
    h_scratch[...] = h

    @pl.when(c == n_chunks - 1)
    def _head():
        # Linear(256,256)+ReLU -> Linear(256,128)+ReLU -> Linear(128,32 pad 128)
        h1 = jnp.maximum(
            jnp.dot(h.astype(jnp.bfloat16), w1_ref[...],
                    preferred_element_type=jnp.float32) + b1_ref[...], 0.0)
        h2 = jnp.maximum(
            jnp.dot(h1.astype(jnp.bfloat16), w2_ref[...],
                    preferred_element_type=jnp.float32) + b2_ref[...], 0.0)
        o_ref[...] = (jnp.dot(h2.astype(jnp.bfloat16), w3_ref[...],
                              preferred_element_type=jnp.float32)
                      + b3_ref[...]).astype(o_ref.dtype)


def _vmem_limit_bytes(Tc, Bp, Dp1, H):
    """Explicit scoped-VMEM budget sized to the actual buffers (+ headroom)."""
    bf, f4, dbl = 2, 4, 2
    x_chunk = Tc * Bp * max(Dp1, 128) * bf * dbl            # lane-padded, 2 bufs
    weights = (max(Dp1, 8) * 3 * H + H * 3 * H + H * 256
               + 256 * 128 + 128 * OUT_PAD) * bf * dbl
    biases = (3 * H + 256 + 128 + OUT_PAD) * f4 * dbl
    tidx = Bp * 128 * f4 * dbl
    out = Bp * OUT_PAD * f4 * dbl
    gi = Tc * max(Bp, 16) * 3 * H * bf                      # bf16 sublane pad
    h = Bp * H * f4
    est = x_chunk + weights + biases + tidx + out + gi + h
    return int(min(max(2 * est + (8 << 20), 24 << 20), 48 << 20))


def _run_fused(t_idx, x_flat, p, Tc):
    """t_idx: (Bp, 1) int32;  x_flat: (Tp*Bp, D+1) bf16 (time-major, padded)."""
    Bp = t_idx.shape[0]
    TB, Dp1 = x_flat.shape
    n_chunks = TB // (Tc * Bp)
    H = HIDDEN

    full = lambda a: pl.BlockSpec(a.shape, lambda c, _n=a.ndim: (0,) * _n)

    return pl.pallas_call(
        _fused_kernel,
        out_shape=jax.ShapeDtypeStruct((Bp, OUT_PAD), jnp.float32),
        grid=(n_chunks,),
        in_specs=[
            full(t_idx),
            pl.BlockSpec((Tc * Bp, Dp1), lambda c: (c, 0)),   # pipelined x chunk
            full(p["w_ih"]), full(p["w_hh"]), full(p["b_hh"]),
            full(p["w1"]), full(p["b1"]), full(p["w2"]), full(p["b2"]),
            full(p["w3"]), full(p["b3"]),
        ],
        out_specs=pl.BlockSpec((Bp, OUT_PAD), lambda c: (0, 0)),
        scratch_shapes=[
            pltpu.VMEM((Tc, Bp, 3 * H), jnp.bfloat16),   # bf16 gi for this chunk
            pltpu.VMEM((Bp, H), jnp.float32),            # h carried across chunks
        ],
        compiler_params=pltpu.CompilerParams(
            dimension_semantics=("arbitrary",),
            vmem_limit_bytes=_vmem_limit_bytes(Tc, Bp, Dp1, H)),
    )(t_idx, x_flat, p["w_ih"], p["w_hh"], p["b_hh"],
      p["w1"], p["b1"], p["w2"], p["b2"], p["w3"], p["b3"])


# ---------------------------------------------------------------------------
# Parameter construction (mirrors the PyTorch __init__; weights stored bf16)
# ---------------------------------------------------------------------------
def make_params(key, input_dim):
    H = HIDDEN
    k_gru, k1, k2, k3 = jax.random.split(key, 4)

    # GRU params: PyTorch default init uniform(-1/sqrt(H), 1/sqrt(H))
    bound = 1.0 / jnp.sqrt(jnp.float32(H))
    kih, khh, kbi, kbh = jax.random.split(k_gru, 4)
    w_ih = jax.random.uniform(kih, (3 * H, input_dim), jnp.float32, -bound, bound)
    w_hh = jax.random.uniform(khh, (3 * H, H), jnp.float32, -bound, bound)
    b_ih = jax.random.uniform(kbi, (3 * H,), jnp.float32, -bound, bound)
    b_hh = jax.random.uniform(kbh, (3 * H,), jnp.float32, -bound, bound)

    # Fold b_ih into w_ih as an extra input row (matches the constant-1 lane
    # appended to x) so the kernel needs no separate bias broadcast-add.
    w_ih_aug = jnp.concatenate([w_ih.T, b_ih.reshape(1, 3 * H)], axis=0)  # (D+1,3H)

    # MLP: orthogonal weights (gain sqrt(2), sqrt(2), 1), zero biases
    ortho = lambda k, shape, gain: jax.nn.initializers.orthogonal(scale=gain)(
        k, shape, jnp.float32)
    w1 = ortho(k1, (256, H), 2 ** 0.5)       # (out, in) like PyTorch
    w2 = ortho(k2, (128, 256), 2 ** 0.5)
    w3 = ortho(k3, (32, 128), 1.0)

    # pad last layer to 128 output lanes (lane-dense store); zeros elsewhere
    w3_pad = jnp.zeros((128, OUT_PAD), jnp.float32).at[:, :OUT_DIM].set(w3.T)

    return dict(
        w_ih=w_ih_aug.astype(jnp.bfloat16),   # (D+1, 3H), last row = b_ih
        w_hh=w_hh.T.astype(jnp.bfloat16),     # (H, 3H)
        b_hh=b_hh.reshape(1, 3 * H),          # f32
        w1=w1.T.astype(jnp.bfloat16), b1=jnp.zeros((1, 256), jnp.float32),
        w2=w2.T.astype(jnp.bfloat16), b2=jnp.zeros((1, 128), jnp.float32),
        w3=w3_pad.astype(jnp.bfloat16), b3=jnp.zeros((1, OUT_PAD), jnp.float32),
    )


# ---------------------------------------------------------------------------
# Forward pass (matches Discriminator.forward; handles tensor or int seq_len)
# ---------------------------------------------------------------------------
@functools.partial(jax.jit, static_argnames=("time_chunk",))
def discriminator_forward(params, s, seq_len, time_chunk=None):
    # s: (B, T, D) batch_first like PyTorch; seq_len: (B,) lengths or scalar int
    if s.ndim < 3:
        s = s[None, ...]
    B, T, D = s.shape
    Bp = max(SUBLANE, ((B + SUBLANE - 1) // SUBLANE) * SUBLANE)
    Tc = min(T, DEFAULT_TIME_CHUNK) if time_chunk is None else int(time_chunk)
    Tp = ((T + Tc - 1) // Tc) * Tc

    # seq_len==0 (the int default) wraps to the last timestep, matching
    # PyTorch's out[:, -1]; tensor seq_len values are expected in [1, T].
    seq_len = jnp.asarray(seq_len, jnp.int32)
    t_idx = (jnp.broadcast_to(seq_len, (B,)) - 1) % T
    t_idx = jnp.pad(t_idx, (0, Bp - B)).reshape(Bp, 1)

    # time-major, batch padded to a sublane, time padded to a chunk multiple,
    # constant-1 lane appended so w_ih's extra row applies b_ih inside the MXU.
    # TODO(synk): for very large T*B*D, pull batch-first blocks straight from
    # HBM via the chunk index_map instead of this wrapper-side transpose+pad.
    x = jnp.transpose(s, (1, 0, 2))                             # (T, B, D)
    x = jnp.pad(x, ((0, Tp - T), (0, Bp - B), (0, 0)))          # (Tp, Bp, D)
    x = jnp.concatenate([x, jnp.ones((Tp, Bp, 1), x.dtype)], axis=-1)
    x = x.astype(jnp.bfloat16).reshape(Tp * Bp, D + 1)

    out = _run_fused(t_idx, x, params, Tc)                      # (Bp, 128)
    return out[:B, :OUT_DIM]                                    # (B, 32)


# ---------------------------------------------------------------------------
# Pure-JAX reference (same bf16 matmul operands / bf16 gi / f32 gate math)
# ---------------------------------------------------------------------------
def reference_forward(params, s, seq_len):
    B, T, D = s.shape
    H = HIDDEN
    x = jnp.concatenate([s, jnp.ones((B, T, 1), s.dtype)], axis=-1)
    x = x.astype(jnp.bfloat16)
    gi_all = jnp.einsum("btd,dg->btg", x, params["w_ih"],
                        preferred_element_type=jnp.float32)
    gi_all = gi_all.astype(jnp.bfloat16).astype(jnp.float32)    # bf16 staging
    h = jnp.zeros((B, H), jnp.float32)
    outs = []
    for t in range(T):
        gh = jnp.dot(h.astype(jnp.bfloat16), params["w_hh"],
                     preferred_element_type=jnp.float32) + params["b_hh"]
        gi = gi_all[:, t]
        r = jax.nn.sigmoid(gi[:, :H] + gh[:, :H])
        z = jax.nn.sigmoid(gi[:, H:2 * H] + gh[:, H:2 * H])
        n = jnp.tanh(gi[:, 2 * H:] + r * gh[:, 2 * H:])
        h = (1.0 - z) * n + z * h
        outs.append(h)
    out = jnp.stack(outs, axis=1)                               # (B, T, H)
    t_idx = (jnp.broadcast_to(jnp.asarray(seq_len, jnp.int32), (B,)) - 1) % T
    xsel = out[jnp.arange(B), t_idx]
    h1 = jnp.maximum(jnp.dot(xsel.astype(jnp.bfloat16), params["w1"],
                             preferred_element_type=jnp.float32) + params["b1"], 0.0)
    h2 = jnp.maximum(jnp.dot(h1.astype(jnp.bfloat16), params["w2"],
                             preferred_element_type=jnp.float32) + params["b2"], 0.0)
    o = jnp.dot(h2.astype(jnp.bfloat16), params["w3"],
                preferred_element_type=jnp.float32) + params["b3"]
    return o[:, :OUT_DIM]


if __name__ == "__main__":
    key = jax.random.PRNGKey(0)
    B, T, D = 2, 8, 8          # ob_shape = (T, D) -> GRU input dim = ob_shape[-1]

    k_params, k_s = jax.random.split(key)
    params = make_params(k_params, D)
    s = jax.random.normal(k_s, (B, T, D), jnp.float32)

    # Tensor seq_len + two time chunks (exercises cross-chunk carry + freeze).
    seq_len = jnp.array([T, T - 2], dtype=jnp.int32)
    out = discriminator_forward(params, s, seq_len, time_chunk=4)
    jax.block_until_ready(out)
    assert out.shape == (B, OUT_DIM) and out.dtype == jnp.float32
    ref = reference_forward(params, s, seq_len)
    np.testing.assert_allclose(np.asarray(out), np.asarray(ref),
                               atol=2e-2, rtol=2e-2)

    # Default int seq_len (0 -> last timestep), single-chunk path.
    out0 = discriminator_forward(params, s, 0)
    jax.block_until_ready(out0)
    ref0 = reference_forward(params, s, 0)
    np.testing.assert_allclose(np.asarray(out0), np.asarray(ref0),
                               atol=2e-2, rtol=2e-2)

    print("KERNEL_OK")
</pallas_src>

<mosaic_0001>
module attributes {stable_mosaic.version = 11 : i64} {
  func.func @_fused_kernel(%arg0: i32, %arg1: memref<8x1xi32, #tpu.memory_space<vmem>>, %arg2: memref<32x9xbf16, #tpu.memory_space<vmem>>, %arg3: memref<9x768xbf16, #tpu.memory_space<vmem>>, %arg4: memref<256x768xbf16, #tpu.memory_space<vmem>>, %arg5: memref<1x768xf32, #tpu.memory_space<vmem>>, %arg6: memref<256x256xbf16, #tpu.memory_space<vmem>>, %arg7: memref<1x256xf32, #tpu.memory_space<vmem>>, %arg8: memref<256x128xbf16, #tpu.memory_space<vmem>>, %arg9: memref<1x128xf32, #tpu.memory_space<vmem>>, %arg10: memref<128x128xbf16, #tpu.memory_space<vmem>>, %arg11: memref<1x128xf32, #tpu.memory_space<vmem>>, %arg12: memref<8x128xf32, #tpu.memory_space<vmem>>, %arg13: memref<4x8x768xbf16, #tpu.memory_space<vmem>>, %arg14: memref<8x256xf32, #tpu.memory_space<vmem>>) attributes {dimension_semantics = [#tpu.dimension_semantics<arbitrary>], iteration_bounds = array<i64: 2>, scalar_prefetch = 0 : i64, scratch_operands = 2 : i64, tpu.core_type = #tpu.core_type<tc>, window_params = [{pipeline_mode = #tpu.pipeline_mode<synchronous>, transform_indices = @transform_0, window_bounds = array<i64: 8, 1>}, {transform_indices = @transform_1, window_bounds = array<i64: 32, 9>}, {pipeline_mode = #tpu.pipeline_mode<synchronous>, transform_indices = @transform_2, window_bounds = array<i64: 9, 768>}, {pipeline_mode = #tpu.pipeline_mode<synchronous>, transform_indices = @transform_3, window_bounds = array<i64: 256, 768>}, {pipeline_mode = #tpu.pipeline_mode<synchronous>, transform_indices = @transform_4, window_bounds = array<i64: 1, 768>}, {pipeline_mode = #tpu.pipeline_mode<synchronous>, transform_indices = @transform_5, window_bounds = array<i64: 256, 256>}, {pipeline_mode = #tpu.pipeline_mode<synchronous>, transform_indices = @transform_6, window_bounds = array<i64: 1, 256>}, {pipeline_mode = #tpu.pipeline_mode<synchronous>, transform_indices = @transform_7, window_bounds = array<i64: 256, 128>}, {pipeline_mode = #tpu.pipeline_mode<synchronous>, transform_indices = @transform_8, window_bounds = array<i64: 1, 128>}, {pipeline_mode = #tpu.pipeline_mode<synchronous>, transform_indices = @transform_9, window_bounds = array<i64: 128, 128>}, {pipeline_mode = #tpu.pipeline_mode<synchronous>, transform_indices = @transform_10, window_bounds = array<i64: 1, 128>}, {pipeline_mode = #tpu.pipeline_mode<synchronous>, transform_indices = @transform_11, window_bounds = array<i64: 8, 128>}]} {
    %c0_i32 = arith.constant 0 : i32
    %0 = arith.cmpi eq, %arg0, %c0_i32 : i32
    %1 = arith.extui %0 : i1 to i32
    %c0_i32_0 = arith.constant 0 : i32
    %2 = arith.cmpi ne, %1, %c0_i32_0 : i32
    scf.if %2 {
      %cst_67 = arith.constant 0.000000e+00 : f32
      %211 = vector.broadcast %cst_67 : f32 to vector<8x256xf32>
      %c0_68 = arith.constant 0 : index
      %c0_69 = arith.constant 0 : index
      %212 = vector.load %arg14[%c0_68, %c0_69] : memref<8x256xf32, #tpu.memory_space<vmem>>, vector<8x256xf32>
      tpu.vector_store %arg14[%c0_68, %c0_69], %211 {strides = array<i32>} : memref<8x256xf32, #tpu.memory_space<vmem>>, vector<8x256xf32>,
    } else {
    }
    %c0 = arith.constant 0 : index
    %c0_1 = arith.constant 0 : index
    %3 = vector.load %arg2[%c0, %c0_1] : memref<32x9xbf16, #tpu.memory_space<vmem>>, vector<32x9xbf16>
    %c0_2 = arith.constant 0 : index
    %c0_3 = arith.constant 0 : index
    %4 = vector.load %arg3[%c0_2, %c0_3] : memref<9x768xbf16, #tpu.memory_space<vmem>>, vector<9x768xbf16>
    %cst = arith.constant dense<0.000000e+00> : vector<32x768xf32>
    %5 = tpu.matmul %3, %4, %cst {dimension_numbers = #tpu.dot_dimension_numbers<[1], [0], [0], [1], [0, 0, 1, 1], [], []>} : vector<32x9xbf16>, vector<9x768xbf16>, vector<32x768xf32> -> vector<32x768xf32>
    %6 = vector.extract_strided_slice %5 {offsets = [0, 0], sizes = [8, 768], strides = [1, 1]} : vector<32x768xf32> to vector<8x768xf32>
    %7 = arith.truncf %6 : vector<8x768xf32> to vector<8x768xbf16>
    %c0_4 = arith.constant 0 : index
    %c0_5 = arith.constant 0 : index
    %c0_6 = arith.constant 0 : index
    %8 = vector.load %arg13[%c0_4, %c0_5, %c0_6] : memref<4x8x768xbf16, #tpu.memory_space<vmem>>, vector<1x8x768xbf16>
    %9 = vector.shape_cast %8 : vector<1x8x768xbf16> to vector<8x768xbf16>
    %10 = vector.shape_cast %7 : vector<8x768xbf16> to vector<1x8x768xbf16>
    tpu.vector_store %arg13[%c0_4, %c0_5, %c0_6], %10 {strides = array<i32>} : memref<4x8x768xbf16, #tpu.memory_space<vmem>>, vector<1x8x768xbf16>,
    %11 = vector.extract_strided_slice %5 {offsets = [8, 0], sizes = [8, 768], strides = [1, 1]} : vector<32x768xf32> to vector<8x768xf32>
    %12 = arith.truncf %11 : vector<8x768xf32> to vector<8x768xbf16>
    %c1 = arith.constant 1 : index
    %c0_7 = arith.constant 0 : index
    %c0_8 = arith.constant 0 : index
    %13 = vector.load %arg13[%c1, %c0_7, %c0_8] : memref<4x8x768xbf16, #tpu.memory_space<vmem>>, vector<1x8x768xbf16>
    %14 = vector.shape_cast %13 : vector<1x8x768xbf16> to vector<8x768xbf16>
    %15 = vector.shape_cast %12 : vector<8x768xbf16> to vector<1x8x768xbf16>
    tpu.vector_store %arg13[%c1, %c0_7, %c0_8], %15 {strides = array<i32>} : memref<4x8x768xbf16, #tpu.memory_space<vmem>>, vector<1x8x768xbf16>,
    %16 = vector.extract_strided_slice %5 {offsets = [16, 0], sizes = [8, 768], strides = [1, 1]} : vector<32x768xf32> to vector<8x768xf32>
    %17 = arith.truncf %16 : vector<8x768xf32> to vector<8x768xbf16>
    %c2 = arith.constant 2 : index
    %c0_9 = arith.constant 0 : index
    %c0_10 = arith.constant 0 : index
    %18 = vector.load %arg13[%c2, %c0_9, %c0_10] : memref<4x8x768xbf16, #tpu.memory_space<vmem>>, vector<1x8x768xbf16>
    %19 = vector.shape_cast %18 : vector<1x8x768xbf16> to vector<8x768xbf16>
    %20 = vector.shape_cast %17 : vector<8x768xbf16> to vector<1x8x768xbf16>
    tpu.vector_store %arg13[%c2, %c0_9, %c0_10], %20 {strides = array<i32>} : memref<4x8x768xbf16, #tpu.memory_space<vmem>>, vector<1x8x768xbf16>,
    %21 = vector.extract_strided_slice %5 {offsets = [24, 0], sizes = [8, 768], strides = [1, 1]} : vector<32x768xf32> to vector<8x768xf32>
    %22 = arith.truncf %21 : vector<8x768xf32> to vector<8x768xbf16>
    %c3 = arith.constant 3 : index
    %c0_11 = arith.constant 0 : index
    %c0_12 = arith.constant 0 : index
    %23 = vector.load %arg13[%c3, %c0_11, %c0_12] : memref<4x8x768xbf16, #tpu.memory_space<vmem>>, vector<1x8x768xbf16>
    %24 = vector.shape_cast %23 : vector<1x8x768xbf16> to vector<8x768xbf16>
    %25 = vector.shape_cast %22 : vector<8x768xbf16> to vector<1x8x768xbf16>
    tpu.vector_store %arg13[%c3, %c0_11, %c0_12], %25 {strides = array<i32>} : memref<4x8x768xbf16, #tpu.memory_space<vmem>>, vector<1x8x768xbf16>,
    %c0_13 = arith.constant 0 : index
    %c0_14 = arith.constant 0 : index
    %26 = vector.load %arg4[%c0_13, %c0_14] : memref<256x768xbf16, #tpu.memory_space<vmem>>, vector<256x768xbf16>
    %c0_15 = arith.constant 0 : index
    %c0_16 = arith.constant 0 : index
    %27 = vector.load %arg5[%c0_15, %c0_16] : memref<1x768xf32, #tpu.memory_space<vmem>>, vector<1x768xf32>
    %c0_17 = arith.constant 0 : index
    %c0_18 = arith.constant 0 : index
    %28 = vector.load %arg1[%c0_17, %c0_18] : memref<8x1xi32, #tpu.memory_space<vmem>>, vector<8x1xi32>
    %c4_i32 = arith.constant 4 : i32
    %29 = arith.muli %arg0, %c4_i32 : i32
    %c0_19 = arith.constant 0 : index
    %c0_20 = arith.constant 0 : index
    %30 = vector.load %arg14[%c0_19, %c0_20] : memref<8x256xf32, #tpu.memory_space<vmem>>, vector<8x256xf32>
    %c0_i32_21 = arith.constant 0 : i32
    %31 = arith.index_cast %c0_i32_21 : i32 to index
    %c0_22 = arith.constant 0 : index
    %c0_23 = arith.constant 0 : index
    %32 = vector.load %arg13[%31, %c0_22, %c0_23] : memref<4x8x768xbf16, #tpu.memory_space<vmem>>, vector<1x8x768xbf16>
    %33 = vector.shape_cast %32 : vector<1x8x768xbf16> to vector<8x768xbf16>
    %34 = arith.extf %33 : vector<8x768xbf16> to vector<8x768xf32>
    %35 = arith.truncf %30 : vector<8x256xf32> to vector<8x256xbf16>
    %cst_24 = arith.constant dense<0.000000e+00> : vector<8x768xf32>
    %36 = tpu.matmul %35, %26, %cst_24 {dimension_numbers = #tpu.dot_dimension_numbers<[1], [0], [0], [1], [0, 0, 1, 1], [], []>} : vector<8x256xbf16>, vector<256x768xbf16>, vector<8x768xf32> -> vector<8x768xf32>
    %37 = vector.broadcast %27 : vector<1x768xf32> to vector<8x768xf32>
    %38 = arith.addf %36, %37 : vector<8x768xf32>
    %39 = vector.extract_strided_slice %34 {offsets = [0, 0], sizes = [8, 256], strides = [1, 1]} : vector<8x768xf32> to vector<8x256xf32>
    %40 = vector.extract_strided_slice %38 {offsets = [0, 0], sizes = [8, 256], strides = [1, 1]} : vector<8x768xf32> to vector<8x256xf32>
    %41 = arith.addf %39, %40 : vector<8x256xf32>
    %42 = vector.extract_strided_slice %34 {offsets = [0, 256], sizes = [8, 256], strides = [1, 1]} : vector<8x768xf32> to vector<8x256xf32>
    %43 = vector.extract_strided_slice %38 {offsets = [0, 256], sizes = [8, 256], strides = [1, 1]} : vector<8x768xf32> to vector<8x256xf32>
    %44 = arith.addf %42, %43 : vector<8x256xf32>
    %cst_25 = arith.constant 5.000000e-01 : f32
    %45 = vector.broadcast %cst_25 : f32 to vector<8x256xf32>
    %46 = arith.mulf %45, %41 : vector<8x256xf32>
    %47 = math.tanh %46 : vector<8x256xf32>
    %cst_26 = arith.constant 1.000000e+00 : f32
    %48 = vector.broadcast %cst_26 : f32 to vector<8x256xf32>
    %49 = arith.addf %48, %47 : vector<8x256xf32>
    %cst_27 = arith.constant 5.000000e-01 : f32
    %50 = vector.broadcast %cst_27 : f32 to vector<8x256xf32>
    %51 = arith.mulf %50, %49 : vector<8x256xf32>
    %cst_28 = arith.constant 5.000000e-01 : f32
    %52 = vector.broadcast %cst_28 : f32 to vector<8x256xf32>
    %53 = arith.mulf %52, %44 : vector<8x256xf32>
    %54 = math.tanh %53 : vector<8x256xf32>
    %cst_29 = arith.constant 1.000000e+00 : f32
    %55 = vector.broadcast %cst_29 : f32 to vector<8x256xf32>
    %56 = arith.addf %55, %54 : vector<8x256xf32>
    %cst_30 = arith.constant 5.000000e-01 : f32
    %57 = vector.broadcast %cst_30 : f32 to vector<8x256xf32>
    %58 = arith.mulf %57, %56 : vector<8x256xf32>
    %59 = vector.extract_strided_slice %34 {offsets = [0, 512], sizes = [8, 256], strides = [1, 1]} : vector<8x768xf32> to vector<8x256xf32>
    %60 = vector.extract_strided_slice %38 {offsets = [0, 512], sizes = [8, 256], strides = [1, 1]} : vector<8x768xf32> to vector<8x256xf32>
    %61 = arith.mulf %51, %60 : vector<8x256xf32>
    %62 = arith.addf %59, %61 : vector<8x256xf32>
    %63 = math.tanh %62 : vector<8x256xf32>
    %cst_31 = arith.constant 1.000000e+00 : f32
    %64 = vector.broadcast %cst_31 : f32 to vector<8x256xf32>
    %65 = arith.subf %64, %58 : vector<8x256xf32>
    %66 = arith.mulf %65, %63 : vector<8x256xf32>
    %67 = arith.mulf %58, %30 : vector<8x256xf32>
    %68 = arith.addf %66, %67 : vector<8x256xf32>
    %69 = arith.addi %29, %c0_i32_21 : i32
    %70 = vector.broadcast %69 : i32 to vector<8x1xi32>
    %71 = arith.cmpi sle, %70, %28 : vector<8x1xi32>
    %72 = vector.shape_cast %71 : vector<8x1xi1> to vector<8x1xi1>
    %73 = vector.broadcast %72 : vector<8x1xi1> to vector<8x256xi1>
    %74 = arith.select %73, %68, %30 : vector<8x256xi1>, vector<8x256xf32>
    %c1_i32 = arith.constant 1 : i32
    %75 = arith.index_cast %c1_i32 : i32 to index
    %c0_32 = arith.constant 0 : index
    %c0_33 = arith.constant 0 : index
    %76 = vector.load %arg13[%75, %c0_32, %c0_33] : memref<4x8x768xbf16, #tpu.memory_space<vmem>>, vector<1x8x768xbf16>
    %77 = vector.shape_cast %76 : vector<1x8x768xbf16> to vector<8x768xbf16>
    %78 = arith.extf %77 : vector<8x768xbf16> to vector<8x768xf32>
    %79 = arith.truncf %74 : vector<8x256xf32> to vector<8x256xbf16>
    %cst_34 = arith.constant dense<0.000000e+00> : vector<8x768xf32>
    %80 = tpu.matmul %79, %26, %cst_34 {dimension_numbers = #tpu.dot_dimension_numbers<[1], [0], [0], [1], [0, 0, 1, 1], [], []>} : vector<8x256xbf16>, vector<256x768xbf16>, vector<8x768xf32> -> vector<8x768xf32>
    %81 = vector.broadcast %27 : vector<1x768xf32> to vector<8x768xf32>
    %82 = arith.addf %80, %81 : vector<8x768xf32>
    %83 = vector.extract_strided_slice %78 {offsets = [0, 0], sizes = [8, 256], strides = [1, 1]} : vector<8x768xf32> to vector<8x256xf32>
    %84 = vector.extract_strided_slice %82 {offsets = [0, 0], sizes = [8, 256], strides = [1, 1]} : vector<8x768xf32> to vector<8x256xf32>
    %85 = arith.addf %83, %84 : vector<8x256xf32>
    %86 = vector.extract_strided_slice %78 {offsets = [0, 256], sizes = [8, 256], strides = [1, 1]} : vector<8x768xf32> to vector<8x256xf32>
    %87 = vector.extract_strided_slice %82 {offsets = [0, 256], sizes = [8, 256], strides = [1, 1]} : vector<8x768xf32> to vector<8x256xf32>
    %88 = arith.addf %86, %87 : vector<8x256xf32>
    %cst_35 = arith.constant 5.000000e-01 : f32
    %89 = vector.broadcast %cst_35 : f32 to vector<8x256xf32>
    %90 = arith.mulf %89, %85 : vector<8x256xf32>
    %91 = math.tanh %90 : vector<8x256xf32>
    %cst_36 = arith.constant 1.000000e+00 : f32
    %92 = vector.broadcast %cst_36 : f32 to vector<8x256xf32>
    %93 = arith.addf %92, %91 : vector<8x256xf32>
    %cst_37 = arith.constant 5.000000e-01 : f32
    %94 = vector.broadcast %cst_37 : f32 to vector<8x256xf32>
    %95 = arith.mulf %94, %93 : vector<8x256xf32>
    %cst_38 = arith.constant 5.000000e-01 : f32
    %96 = vector.broadcast %cst_38 : f32 to vector<8x256xf32>
    %97 = arith.mulf %96, %88 : vector<8x256xf32>
    %98 = math.tanh %97 : vector<8x256xf32>
    %cst_39 = arith.constant 1.000000e+00 : f32
    %99 = vector.broadcast %cst_39 : f32 to vector<8x256xf32>
    %100 = arith.addf %99, %98 : vector<8x256xf32>
    %cst_40 = arith.constant 5.000000e-01 : f32
    %101 = vector.broadcast %cst_40 : f32 to vector<8x256xf32>
    %102 = arith.mulf %101, %100 : vector<8x256xf32>
    %103 = vector.extract_strided_slice %78 {offsets = [0, 512], sizes = [8, 256], strides = [1, 1]} : vector<8x768xf32> to vector<8x256xf32>
    %104 = vector.extract_strided_slice %82 {offsets = [0, 512], sizes = [8, 256], strides = [1, 1]} : vector<8x768xf32> to vector<8x256xf32>
    %105 = arith.mulf %95, %104 : vector<8x256xf32>
    %106 = arith.addf %103, %105 : vector<8x256xf32>
    %107 = math.tanh %106 : vector<8x256xf32>
    %cst_41 = arith.constant 1.000000e+00 : f32
    %108 = vector.broadcast %cst_41 : f32 to vector<8x256xf32>
    %109 = arith.subf %108, %102 : vector<8x256xf32>
    %110 = arith.mulf %109, %107 : vector<8x256xf32>
    %111 = arith.mulf %102, %74 : vector<8x256xf32>
    %112 = arith.addf %110, %111 : vector<8x256xf32>
    %113 = arith.addi %29, %c1_i32 : i32
    %114 = vector.broadcast %113 : i32 to vector<8x1xi32>
    %115 = arith.cmpi sle, %114, %28 : vector<8x1xi32>
    %116 = vector.shape_cast %115 : vector<8x1xi1> to vector<8x1xi1>
    %117 = vector.broadcast %116 : vector<8x1xi1> to vector<8x256xi1>
    %118 = arith.select %117, %112, %74 : vector<8x256xi1>, vector<8x256xf32>
    %c2_i32 = arith.constant 2 : i32
    %119 = arith.index_cast %c2_i32 : i32 to index
    %c0_42 = arith.constant 0 : index
    %c0_43 = arith.constant 0 : index
    %120 = vector.load %arg13[%119, %c0_42, %c0_43] : memref<4x8x768xbf16, #tpu.memory_space<vmem>>, vector<1x8x768xbf16>
    %121 = vector.shape_cast %120 : vector<1x8x768xbf16> to vector<8x768xbf16>
    %122 = arith.extf %121 : vector<8x768xbf16> to vector<8x768xf32>
    %123 = arith.truncf %118 : vector<8x256xf32> to vector<8x256xbf16>
    %cst_44 = arith.constant dense<0.000000e+00> : vector<8x768xf32>
    %124 = tpu.matmul %123, %26, %cst_44 {dimension_numbers = #tpu.dot_dimension_numbers<[1], [0], [0], [1], [0, 0, 1, 1], [], []>} : vector<8x256xbf16>, vector<256x768xbf16>, vector<8x768xf32> -> vector<8x768xf32>
    %125 = vector.broadcast %27 : vector<1x768xf32> to vector<8x768xf32>
    %126 = arith.addf %124, %125 : vector<8x768xf32>
    %127 = vector.extract_strided_slice %122 {offsets = [0, 0], sizes = [8, 256], strides = [1, 1]} : vector<8x768xf32> to vector<8x256xf32>
    %128 = vector.extract_strided_slice %126 {offsets = [0, 0], sizes = [8, 256], strides = [1, 1]} : vector<8x768xf32> to vector<8x256xf32>
    %129 = arith.addf %127, %128 : vector<8x256xf32>
    %130 = vector.extract_strided_slice %122 {offsets = [0, 256], sizes = [8, 256], strides = [1, 1]} : vector<8x768xf32> to vector<8x256xf32>
    %131 = vector.extract_strided_slice %126 {offsets = [0, 256], sizes = [8, 256], strides = [1, 1]} : vector<8x768xf32> to vector<8x256xf32>
    %132 = arith.addf %130, %131 : vector<8x256xf32>
    %cst_45 = arith.constant 5.000000e-01 : f32
    %133 = vector.broadcast %cst_45 : f32 to vector<8x256xf32>
    %134 = arith.mulf %133, %129 : vector<8x256xf32>
    %135 = math.tanh %134 : vector<8x256xf32>
    %cst_46 = arith.constant 1.000000e+00 : f32
    %136 = vector.broadcast %cst_46 : f32 to vector<8x256xf32>
    %137 = arith.addf %136, %135 : vector<8x256xf32>
    %cst_47 = arith.constant 5.000000e-01 : f32
    %138 = vector.broadcast %cst_47 : f32 to vector<8x256xf32>
    %139 = arith.mulf %138, %137 : vector<8x256xf32>
    %cst_48 = arith.constant 5.000000e-01 : f32
    %140 = vector.broadcast %cst_48 : f32 to vector<8x256xf32>
    %141 = arith.mulf %140, %132 : vector<8x256xf32>
    %142 = math.tanh %141 : vector<8x256xf32>
    %cst_49 = arith.constant 1.000000e+00 : f32
    %143 = vector.broadcast %cst_49 : f32 to vector<8x256xf32>
    %144 = arith.addf %143, %142 : vector<8x256xf32>
    %cst_50 = arith.constant 5.000000e-01 : f32
    %145 = vector.broadcast %cst_50 : f32 to vector<8x256xf32>
    %146 = arith.mulf %145, %144 : vector<8x256xf32>
    %147 = vector.extract_strided_slice %122 {offsets = [0, 512], sizes = [8, 256], strides = [1, 1]} : vector<8x768xf32> to vector<8x256xf32>
    %148 = vector.extract_strided_slice %126 {offsets = [0, 512], sizes = [8, 256], strides = [1, 1]} : vector<8x768xf32> to vector<8x256xf32>
    %149 = arith.mulf %139, %148 : vector<8x256xf32>
    %150 = arith.addf %147, %149 : vector<8x256xf32>
    %151 = math.tanh %150 : vector<8x256xf32>
    %cst_51 = arith.constant 1.000000e+00 : f32
    %152 = vector.broadcast %cst_51 : f32 to vector<8x256xf32>
    %153 = arith.subf %152, %146 : vector<8x256xf32>
    %154 = arith.mulf %153, %151 : vector<8x256xf32>
    %155 = arith.mulf %146, %118 : vector<8x256xf32>
    %156 = arith.addf %154, %155 : vector<8x256xf32>
    %157 = arith.addi %29, %c2_i32 : i32
    %158 = vector.broadcast %157 : i32 to vector<8x1xi32>
    %159 = arith.cmpi sle, %158, %28 : vector<8x1xi32>
    %160 = vector.shape_cast %159 : vector<8x1xi1> to vector<8x1xi1>
    %161 = vector.broadcast %160 : vector<8x1xi1> to vector<8x256xi1>
    %162 = arith.select %161, %156, %118 : vector<8x256xi1>, vector<8x256xf32>
    %c3_i32 = arith.constant 3 : i32
    %163 = arith.index_cast %c3_i32 : i32 to index
    %c0_52 = arith.constant 0 : index
    %c0_53 = arith.constant 0 : index
    %164 = vector.load %arg13[%163, %c0_52, %c0_53] : memref<4x8x768xbf16, #tpu.memory_space<vmem>>, vector<1x8x768xbf16>
    %165 = vector.shape_cast %164 : vector<1x8x768xbf16> to vector<8x768xbf16>
    %166 = arith.extf %165 : vector<8x768xbf16> to vector<8x768xf32>
    %167 = arith.truncf %162 : vector<8x256xf32> to vector<8x256xbf16>
    %cst_54 = arith.constant dense<0.000000e+00> : vector<8x768xf32>
    %168 = tpu.matmul %167, %26, %cst_54 {dimension_numbers = #tpu.dot_dimension_numbers<[1], [0], [0], [1], [0, 0, 1, 1], [], []>} : vector<8x256xbf16>, vector<256x768xbf16>, vector<8x768xf32> -> vector<8x768xf32>
    %169 = vector.broadcast %27 : vector<1x768xf32> to vector<8x768xf32>
    %170 = arith.addf %168, %169 : vector<8x768xf32>
    %171 = vector.extract_strided_slice %166 {offsets = [0, 0], sizes = [8, 256], strides = [1, 1]} : vector<8x768xf32> to vector<8x256xf32>
    %172 = vector.extract_strided_slice %170 {offsets = [0, 0], sizes = [8, 256], strides = [1, 1]} : vector<8x768xf32> to vector<8x256xf32>
    %173 = arith.addf %171, %172 : vector<8x256xf32>
    %174 = vector.extract_strided_slice %166 {offsets = [0, 256], sizes = [8, 256], strides = [1, 1]} : vector<8x768xf32> to vector<8x256xf32>
    %175 = vector.extract_strided_slice %170 {offsets = [0, 256], sizes = [8, 256], strides = [1, 1]} : vector<8x768xf32> to vector<8x256xf32>
    %176 = arith.addf %174, %175 : vector<8x256xf32>
    %cst_55 = arith.constant 5.000000e-01 : f32
    %177 = vector.broadcast %cst_55 : f32 to vector<8x256xf32>
    %178 = arith.mulf %177, %173 : vector<8x256xf32>
    %179 = math.tanh %178 : vector<8x256xf32>
    %cst_56 = arith.constant 1.000000e+00 : f32
    %180 = vector.broadcast %cst_56 : f32 to vector<8x256xf32>
    %181 = arith.addf %180, %179 : vector<8x256xf32>
    %cst_57 = arith.constant 5.000000e-01 : f32
    %182 = vector.broadcast %cst_57 : f32 to vector<8x256xf32>
    %183 = arith.mulf %182, %181 : vector<8x256xf32>
    %cst_58 = arith.constant 5.000000e-01 : f32
    %184 = vector.broadcast %cst_58 : f32 to vector<8x256xf32>
    %185 = arith.mulf %184, %176 : vector<8x256xf32>
    %186 = math.tanh %185 : vector<8x256xf32>
    %cst_59 = arith.constant 1.000000e+00 : f32
    %187 = vector.broadcast %cst_59 : f32 to vector<8x256xf32>
    %188 = arith.addf %187, %186 : vector<8x256xf32>
    %cst_60 = arith.constant 5.000000e-01 : f32
    %189 = vector.broadcast %cst_60 : f32 to vector<8x256xf32>
    %190 = arith.mulf %189, %188 : vector<8x256xf32>
    %191 = vector.extract_strided_slice %166 {offsets = [0, 512], sizes = [8, 256], strides = [1, 1]} : vector<8x768xf32> to vector<8x256xf32>
    %192 = vector.extract_strided_slice %170 {offsets = [0, 512], sizes = [8, 256], strides = [1, 1]} : vector<8x768xf32> to vector<8x256xf32>
    %193 = arith.mulf %183, %192 : vector<8x256xf32>
    %194 = arith.addf %191, %193 : vector<8x256xf32>
    %195 = math.tanh %194 : vector<8x256xf32>
    %cst_61 = arith.constant 1.000000e+00 : f32
    %196 = vector.broadcast %cst_61 : f32 to vector<8x256xf32>
    %197 = arith.subf %196, %190 : vector<8x256xf32>
    %198 = arith.mulf %197, %195 : vector<8x256xf32>
    %199 = arith.mulf %190, %162 : vector<8x256xf32>
    %200 = arith.addf %198, %199 : vector<8x256xf32>
    %201 = arith.addi %29, %c3_i32 : i32
    %202 = vector.broadcast %201 : i32 to vector<8x1xi32>
    %203 = arith.cmpi sle, %202, %28 : vector<8x1xi32>
    %204 = vector.shape_cast %203 : vector<8x1xi1> to vector<8x1xi1>
    %205 = vector.broadcast %204 : vector<8x1xi1> to vector<8x256xi1>
    %206 = arith.select %205, %200, %162 : vector<8x256xi1>, vector<8x256xf32>
    %c4_i32_62 = arith.constant 4 : i32
    %c0_63 = arith.constant 0 : index
    %c0_64 = arith.constant 0 : index
    %207 = vector.load %arg14[%c0_63, %c0_64] : memref<8x256xf32, #tpu.memory_space<vmem>>, vector<8x256xf32>
    tpu.vector_store %arg14[%c0_63, %c0_64], %206 {strides = array<i32>} : memref<8x256xf32, #tpu.memory_space<vmem>>, vector<8x256xf32>,
    %c1_i32_65 = arith.constant 1 : i32
    %208 = arith.cmpi eq, %arg0, %c1_i32_65 : i32
    %209 = arith.extui %208 : i1 to i32
    %c0_i32_66 = arith.constant 0 : i32
    %210 = arith.cmpi ne, %209, %c0_i32_66 : i32
    scf.if %210 {
      %211 = arith.truncf %206 : vector<8x256xf32> to vector<8x256xbf16>
      %c0_67 = arith.constant 0 : index
      %c0_68 = arith.constant 0 : index
      %212 = vector.load %arg6[%c0_67, %c0_68] : memref<256x256xbf16, #tpu.memory_space<vmem>>, vector<256x256xbf16>
      %cst_69 = arith.constant dense<0.000000e+00> : vector<8x256xf32>
      %213 = tpu.matmul %211, %212, %cst_69 {dimension_numbers = #tpu.dot_dimension_numbers<[1], [0], [0], [1], [0, 0, 1, 1], [], []>} : vector<8x256xbf16>, vector<256x256xbf16>, vector<8x256xf32> -> vector<8x256xf32>
      %c0_70 = arith.constant 0 : index
      %c0_71 = arith.constant 0 : index
      %214 = vector.load %arg7[%c0_70, %c0_71] : memref<1x256xf32, #tpu.memory_space<vmem>>, vector<1x256xf32>
      %215 = vector.broadcast %214 : vector<1x256xf32> to vector<8x256xf32>
      %216 = arith.addf %213, %215 : vector<8x256xf32>
      %cst_72 = arith.constant 0.000000e+00 : f32
      %217 = vector.broadcast %cst_72 : f32 to vector<8x256xf32>
      %218 = arith.maximumf %216, %217 : vector<8x256xf32>
      %219 = arith.truncf %218 : vector<8x256xf32> to vector<8x256xbf16>
      %c0_73 = arith.constant 0 : index
      %c0_74 = arith.constant 0 : index
      %220 = vector.load %arg8[%c0_73, %c0_74] : memref<256x128xbf16, #tpu.memory_space<vmem>>, vector<256x128xbf16>
      %cst_75 = arith.constant dense<0.000000e+00> : vector<8x128xf32>
      %221 = tpu.matmul %219, %220, %cst_75 {dimension_numbers = #tpu.dot_dimension_numbers<[1], [0], [0], [1], [0, 0, 1, 1], [], []>} : vector<8x256xbf16>, vector<256x128xbf16>, vector<8x128xf32> -> vector<8x128xf32>
      %c0_76 = arith.constant 0 : index
      %c0_77 = arith.constant 0 : index
      %222 = vector.load %arg9[%c0_76, %c0_77] : memref<1x128xf32, #tpu.memory_space<vmem>>, vector<1x128xf32>
      %223 = vector.broadcast %222 : vector<1x128xf32> to vector<8x128xf32>
      %224 = arith.addf %221, %223 : vector<8x128xf32>
      %cst_78 = arith.constant 0.000000e+00 : f32
      %225 = vector.broadcast %cst_78 : f32 to vector<8x128xf32>
      %226 = arith.maximumf %224, %225 : vector<8x128xf32>
      %227 = arith.truncf %226 : vector<8x128xf32> to vector<8x128xbf16>
      %c0_79 = arith.constant 0 : index
      %c0_80 = arith.constant 0 : index
      %228 = vector.load %arg10[%c0_79, %c0_80] : memref<128x128xbf16, #tpu.memory_space<vmem>>, vector<128x128xbf16>
      %cst_81 = arith.constant dense<0.000000e+00> : vector<8x128xf32>
      %229 = tpu.matmul %227, %228, %cst_81 {dimension_numbers = #tpu.dot_dimension_numbers<[1], [0], [0], [1], [0, 0, 1, 1], [], []>} : vector<8x128xbf16>, vector<128x128xbf16>, vector<8x128xf32> -> vector<8x128xf32>
      %c0_82 = arith.constant 0 : index
      %c0_83 = arith.constant 0 : index
      %230 = vector.load %arg11[%c0_82, %c0_83] : memref<1x128xf32, #tpu.memory_space<vmem>>, vector<1x128xf32>
      %231 = vector.broadcast %230 : vector<1x128xf32> to vector<8x128xf32>
      %232 = arith.addf %229, %231 : vector<8x128xf32>
      %c0_84 = arith.constant 0 : index
      %c0_85 = arith.constant 0 : index
      %233 = vector.load %arg12[%c0_84, %c0_85] : memref<8x128xf32, #tpu.memory_space<vmem>>, vector<8x128xf32>
      tpu.vector_store %arg12[%c0_84, %c0_85], %232 {strides = array<i32>} : memref<8x128xf32, #tpu.memory_space<vmem>>, vector<8x128xf32>,
    } else {
    }
    return
  }
  func.func @transform_0(%arg0: i32) -> (i32, i32) {
    %c0_i32 = arith.constant 0 : i32
    %c0_i32_0 = arith.constant 0 : i32
    %c0_i32_1 = arith.constant 0 : i32
    return %c0_i32, %c0_i32_0 : i32, i32
  }
  func.func @transform_1(%arg0: i32) -> (i32, i32) {
    %c0_i32 = arith.constant 0 : i32
    %c0_i32_0 = arith.constant 0 : i32
    return %arg0, %c0_i32 : i32, i32
  }
  func.func @transform_2(%arg0: i32) -> (i32, i32) {
    %c0_i32 = arith.constant 0 : i32
    %c0_i32_0 = arith.constant 0 : i32
    %c0_i32_1 = arith.constant 0 : i32
    return %c0_i32, %c0_i32_0 : i32, i32
  }
  func.func @transform_3(%arg0: i32) -> (i32, i32) {
    %c0_i32 = arith.constant 0 : i32
    %c0_i32_0 = arith.constant 0 : i32
    %c0_i32_1 = arith.constant 0 : i32
    return %c0_i32, %c0_i32_0 : i32, i32
  }
  func.func @transform_4(%arg0: i32) -> (i32, i32) {
    %c0_i32 = arith.constant 0 : i32
    %c0_i32_0 = arith.constant 0 : i32
    %c0_i32_1 = arith.constant 0 : i32
    return %c0_i32, %c0_i32_0 : i32, i32
  }
  func.func @transform_5(%arg0: i32) -> (i32, i32) {
    %c0_i32 = arith.constant 0 : i32
    %c0_i32_0 = arith.constant 0 : i32
    %c0_i32_1 = arith.constant 0 : i32
    return %c0_i32, %c0_i32_0 : i32, i32
  }
  func.func @transform_6(%arg0: i32) -> (i32, i32) {
    %c0_i32 = arith.constant 0 : i32
    %c0_i32_0 = arith.constant 0 : i32
    %c0_i32_1 = arith.constant 0 : i32
    return %c0_i32, %c0_i32_0 : i32, i32
  }
  func.func @transform_7(%arg0: i32) -> (i32, i32) {
    %c0_i32 = arith.constant 0 : i32
    %c0_i32_0 = arith.constant 0 : i32
    %c0_i32_1 = arith.constant 0 : i32
    return %c0_i32, %c0_i32_0 : i32, i32
  }
  func.func @transform_8(%arg0: i32) -> (i32, i32) {
    %c0_i32 = arith.constant 0 : i32
    %c0_i32_0 = arith.constant 0 : i32
    %c0_i32_1 = arith.constant 0 : i32
    return %c0_i32, %c0_i32_0 : i32, i32
  }
  func.func @transform_9(%arg0: i32) -> (i32, i32) {
    %c0_i32 = arith.constant 0 : i32
    %c0_i32_0 = arith.constant 0 : i32
    %c0_i32_1 = arith.constant 0 : i32
    return %c0_i32, %c0_i32_0 : i32, i32
  }
  func.func @transform_10(%arg0: i32) -> (i32, i32) {
    %c0_i32 = arith.constant 0 : i32
    %c0_i32_0 = arith.constant 0 : i32
    %c0_i32_1 = arith.constant 0 : i32
    return %c0_i32, %c0_i32_0 : i32, i32
  }
  func.func @transform_11(%arg0: i32) -> (i32, i32) {
    %c0_i32 = arith.constant 0 : i32
    %c0_i32_0 = arith.constant 0 : i32
    %c0_i32_1 = arith.constant 0 : i32
    return %c0_i32, %c0_i32_0 : i32, i32
  }
}

</mosaic_0001>

<llo_original>
// kernel: discriminator_forward.1
$region0: #{discriminator_forward.1}
  #allocation0 [shape = 'u32[]', space=smem, size = 0x4, offset = 0x4, fixed_abs, tag = 'smem constant byte address 0x4 - core index']
  #allocation1 [shape = 'u32[144,128]{1,0:T(1,128)}', space=vmem, size = 0x12000, scoped, tag = 'internal scratch']
  #allocation2 [shape = 'bf16[4,8,768]{2,1,0:T(8,128)(2,1)}', space=vmem, size = 0xc000, scoped, tag = 'scratch operand']
  #allocation3 [shape = 'f32[8,256]{1,0:T(8,128)}', space=vmem, size = 0x2000, scoped, tag = 'scratch operand']
  %s0 = inlined_call_operand.vmem [shape: s32[8,1], index: 0, kind: input, shape index: {}]
  %s1 = inlined_call_operand.vmem [shape: bf16[64,9], index: 1, kind: input, shape index: {}]
  %s2 = inlined_call_operand.vmem [shape: bf16[9,768], index: 2, kind: input, shape index: {}]
  %s3 = inlined_call_operand.hbm [shape: bf16[256,768], index: 3, kind: input, shape index: {}]
  %s4 = inlined_call_operand.hbm [shape: f32[1,768], index: 4, kind: input, shape index: {}]
  %s5 = inlined_call_operand.hbm [shape: bf16[256,256], index: 5, kind: input, shape index: {}]
  %s6 = inlined_call_operand.vmem [shape: f32[1,256], index: 6, kind: input, shape index: {}]
  %s7 = inlined_call_operand.hbm [shape: bf16[256,128], index: 7, kind: input, shape index: {}]
  %s8 = inlined_call_operand.hbm [shape: f32[1,128], index: 8, kind: input, shape index: {}]
  %s9 = inlined_call_operand.vmem [shape: bf16[128,128], index: 9, kind: input, shape index: {}]
  %s10 = inlined_call_operand.hbm [shape: f32[1,128], index: 10, kind: input, shape index: {}]
  %s11 = inlined_call_operand.vmem [shape: f32[8,128], index: 11, kind: output, shape index: {}]
  %s12 = sld [smem:[#allocation0]]
  $region109: #{discriminator_forward.1} parent=0
    _
  %s14 = ssub.s32 1, %s12
  %s15 = scalar_select 0, %s14, %s12
  $region1: #{discriminator_forward.1} parent=0
    #allocation4 [shape = 'u8[393216]{0}', space=vmem, size = 0x60000, scoped, tag = 'input window, operand 3, single buffered']
    #allocation5 [shape = 's32[2]{0}', space=sflag, size = 0x8, scoped, tag = 'scoped memory for discriminator_forward.1']
    #allocation6 [shape = 'u8[3072]{0}', space=vmem, size = 0xc00, scoped, tag = 'input window, operand 4, single buffered']
    #allocation7 [shape = 's32[1]{0}', space=sflag, size = 0x4, scoped, tag = 'scoped memory for discriminator_forward.1']
    #allocation8 [shape = 'u8[131072]{0}', space=vmem, size = 0x20000, scoped, tag = 'input window, operand 5, single buffered']
    #allocation9 [shape = 'u8[65536]{0}', space=vmem, size = 0x10000, scoped, tag = 'input window, operand 7, single buffered']
    #allocation10 [shape = 's32[1]{0}', space=sflag, size = 0x4, scoped, tag = 'scoped memory for discriminator_forward.1']
    #allocation11 [shape = 'u8[512]{0}', space=vmem, size = 0x400, scoped, tag = 'input window, operand 8, single buffered']
    #allocation12 [shape = 'u8[512]{0}', space=vmem, size = 0x400, scoped, tag = 'input window, operand 10, single buffered']
    #allocation13 [shape = 's32[1]{0}', space=sflag, size = 0x4, scoped, tag = 'scoped memory for discriminator_forward.1']
    %16 = vsyncpa [#allocation5], 0
    %17 = vsyncpa [#allocation7], 0
    %18 = vsyncpa [#allocation10], 0
    %19 = vsyncpa [#allocation13], 0
    loop: start=0, step=1, limit=4
    $region2: #{discriminator_forward.1} parent=1 // loop_pre_header
      _
    $region3: #{discriminator_forward.1} parent=1 // loop_header
      %s21 = sphi 0, %s25
      %p22 = scmp.ge.s32.totalorder %s21, 4
      %s29 = sphi 0, %s29
      %s31 = sphi 0, %s29
      %s32 = sphi 0, %s31
      %s46 = sphi 0, %s32
      %s52 = sphi 0, %s54
      %s55 = sphi 0, %s52
      %s56 = sphi 0, %s55
      %s72 = sphi 0, %s56
      %s76 = sphi 0, %s76
      %s78 = sphi 0, %s76
      %s79 = sphi 0, %s78
      %s93 = sphi 0, %s79
      %s97 = sphi 0, %s97
      %s99 = sphi 0, %s97
      %s100 = sphi 0, %s99
      %s114 = sphi 0, %s100
      %s118 = sphi 0, %s118
      %s120 = sphi 0, %s118
      %s121 = sphi 0, %s120
      %s135 = sphi 0, %s121
      %s139 = sphi 0, %s139
      %s141 = sphi 0, %s139
      %s142 = sphi 0, %s141
      %s156 = sphi 0, %s142
      %s160 = sphi 0, %s160
      %s162 = sphi 0, %s160
      %s163 = sphi 0, %s162
      %s177 = sphi 0, %s163
      %s181 = sphi 0, %s181
      %s183 = sphi 0, %s181
      %s184 = sphi 0, %s183
      %s198 = sphi 0, %s184
      %s202 = sphi 0, %s202
      %s204 = sphi 0, %s202
      %s205 = sphi 0, %s204
      %s219 = sphi 0, %s205
      %s223 = sphi 0, %s223
      %s225 = sphi 0, %s223
      %s226 = sphi 0, %s225
      %s240 = sphi 0, %s226
      %s244 = sphi 0, %s244
      %s246 = sphi 0, %s244
      %s247 = sphi 0, %s246
      %s261 = sphi 0, %s247
      %s265 = sphi 0, %s265
      %s267 = sphi 0, %s265
      %s268 = sphi 0, %s267
      %s282 = sphi 0, %s268
    $region4: #{discriminator_forward.1} parent=1 // loop_header_branch
      %24 = sbr.rel (%p22) target = $region8
    $region5: #{discriminator_forward.1} parent=1 // loop_body
      %s26 = ssub.s32 %s21, 1
      %s27 = ssub.s32 %s21, 2
      %s28 = sadd.s32 %s21, 1
      %s30 = sadd.s32 %s29, 1
      %p33 = scmp.eq.s32.totalorder %s21, 1
      %p34 = scmp.ne.s32.totalorder %s29, %s31
      %p35 = scmp.eq.s32.totalorder %s21, 0
      %p36 = por %p34, %p35
      %p37 = scmp.ne.s32.totalorder %s29, %s31
      %p38 = scmp.eq.s32.totalorder %s26, 1
      %p39 = por %p37, %p38
      %p40 = scmp.ne.s32.totalorder %s31, %s32
      %p41 = scmp.eq.s32.totalorder %s26, 0
      %p42 = por %p40, %p41
      %p43 = scmp.ne.s32.totalorder %s31, %s32
      %p44 = scmp.eq.s32.totalorder %s27, 1
      %p45 = por %p43, %p44
      %p47 = scmp.ne.s32.totalorder %s32, %s46
      %p48 = scmp.eq.s32.totalorder %s27, 0
      %p49 = por %p47, %p48
      %s50 = ssub.s32 %s21, %s28
      %p51 = scmp.eq.s32.totalorder %s50, 0
      %s53 = sadd.s32 %s52, 1
      %s54 = scalar_select %p51, %s52, %s53
      %p57 = pneg %p51
      %p58 = scmp.eq.s32.totalorder %s21, 1
      %p59 = por %p57, %p58
      %p60 = scmp.ne.s32.totalorder %s52, %s55
      %p61 = scmp.eq.s32.totalorder %s21, 0
      %p62 = por %p60, %p61
      %p63 = scmp.ne.s32.totalorder %s52, %s55
      %p64 = scmp.eq.s32.totalorder %s26, 1
      %p65 = por %p63, %p64
      %p66 = scmp.ne.s32.totalorder %s55, %s56
      %p67 = scmp.eq.s32.totalorder %s26, 0
      %p68 = por %p66, %p67
      %p69 = scmp.ne.s32.totalorder %s55, %s56
      %p70 = scmp.eq.s32.totalorder %s27, 1
      %p71 = por %p69, %p70
      %p73 = scmp.ne.s32.totalorder %s56, %s72
      %p74 = scmp.eq.s32.totalorder %s27, 0
      %p75 = por %p73, %p74
      %s77 = sadd.s32 %s76, 1
      %p80 = scmp.eq.s32.totalorder %s21, 1
      %p81 = scmp.ne.s32.totalorder %s76, %s78
      %p82 = scmp.eq.s32.totalorder %s21, 0
      %p83 = por %p81, %p82
      %p84 = scmp.ne.s32.totalorder %s76, %s78
      %p85 = scmp.eq.s32.totalorder %s26, 1
      %p86 = por %p84, %p85
      %p87 = scmp.ne.s32.totalorder %s78, %s79
      %p88 = scmp.eq.s32.totalorder %s26, 0
      %p89 = por %p87, %p88
      %p90 = scmp.ne.s32.totalorder %s78, %s79
      %p91 = scmp.eq.s32.totalorder %s27, 1
      %p92 = por %p90, %p91
      %p94 = scmp.ne.s32.totalorder %s79, %s93
      %p95 = scmp.eq.s32.totalorder %s27, 0
      %p96 = por %p94, %p95
      %s98 = sadd.s32 %s97, 1
      %p101 = scmp.eq.s32.totalorder %s21, 1
      %p102 = scmp.ne.s32.totalorder %s97, %s99
      %p103 = scmp.eq.s32.totalorder %s21, 0
      %p104 = por %p102, %p103
      %p105 = scmp.ne.s32.totalorder %s97, %s99
      %p106 = scmp.eq.s32.totalorder %s26, 1
      %p107 = por %p105, %p106
      %p108 = scmp.ne.s32.totalorder %s99, %s100
      %p109 = scmp.eq.s32.totalorder %s26, 0
      %p110 = por %p108, %p109
      %p111 = scmp.ne.s32.totalorder %s99, %s100
      %p112 = scmp.eq.s32.totalorder %s27, 1
      %p113 = por %p111, %p112
      %p115 = scmp.ne.s32.totalorder %s100, %s114
      %p116 = scmp.eq.s32.totalorder %s27, 0
      %p117 = por %p115, %p116
      %s119 = sadd.s32 %s118, 1
      %p122 = scmp.eq.s32.totalorder %s21, 1
      %p123 = scmp.ne.s32.totalorder %s118, %s120
      %p124 = scmp.eq.s32.totalorder %s21, 0
      %p125 = por %p123, %p124
      %p126 = scmp.ne.s32.totalorder %s118, %s120
      %p127 = scmp.eq.s32.totalorder %s26, 1
      %p128 = por %p126, %p127
      %p129 = scmp.ne.s32.totalorder %s120, %s121
      %p130 = scmp.eq.s32.totalorder %s26, 0
      %p131 = por %p129, %p130
      %p132 = scmp.ne.s32.totalorder %s120, %s121
      %p133 = scmp.eq.s32.totalorder %s27, 1
      %p134 = por %p132, %p133
      %p136 = scmp.ne.s32.totalorder %s121, %s135
      %p137 = scmp.eq.s32.totalorder %s27, 0
      %p138 = por %p136, %p137
      %s140 = sadd.s32 %s139, 1
      %p143 = scmp.eq.s32.totalorder %s21, 1
      %p144 = scmp.ne.s32.totalorder %s139, %s141
      %p145 = scmp.eq.s32.totalorder %s21, 0
      %p146 = por %p144, %p145
      %p147 = scmp.ne.s32.totalorder %s139, %s141
      %p148 = scmp.eq.s32.totalorder %s26, 1
      %p149 = por %p147, %p148
      %p150 = scmp.ne.s32.totalorder %s141, %s142
      %p151 = scmp.eq.s32.totalorder %s26, 0
      %p152 = por %p150, %p151
      %p153 = scmp.ne.s32.totalorder %s141, %s142
      %p154 = scmp.eq.s32.totalorder %s27, 1
      %p155 = por %p153, %p154
      %p157 = scmp.ne.s32.totalorder %s142, %s156
      %p158 = scmp.eq.s32.totalorder %s27, 0
      %p159 = por %p157, %p158
      %s161 = sadd.s32 %s160, 1
      %p164 = scmp.eq.s32.totalorder %s21, 1
      %p165 = scmp.ne.s32.totalorder %s160, %s162
      %p166 = scmp.eq.s32.totalorder %s21, 0
      %p167 = por %p165, %p166
      %p168 = scmp.ne.s32.totalorder %s160, %s162
      %p169 = scmp.eq.s32.totalorder %s26, 1
      %p170 = por %p168, %p169
      %p171 = scmp.ne.s32.totalorder %s162, %s163
      %p172 = scmp.eq.s32.totalorder %s26, 0
      %p173 = por %p171, %p172
      %p174 = scmp.ne.s32.totalorder %s162, %s163
      %p175 = scmp.eq.s32.totalorder %s27, 1
      %p176 = por %p174, %p175
      %p178 = scmp.ne.s32.totalorder %s163, %s177
      %p179 = scmp.eq.s32.totalorder %s27, 0
      %p180 = por %p178, %p179
      %s182 = sadd.s32 %s181, 1
      %p185 = scmp.eq.s32.totalorder %s21, 1
      %p186 = scmp.ne.s32.totalorder %s181, %s183
      %p187 = scmp.eq.s32.totalorder %s21, 0
      %p188 = por %p186, %p187
      %p189 = scmp.ne.s32.totalorder %s181, %s183
      %p190 = scmp.eq.s32.totalorder %s26, 1
      %p191 = por %p189, %p190
      %p192 = scmp.ne.s32.totalorder %s183, %s184
      %p193 = scmp.eq.s32.totalorder %s26, 0
      %p194 = por %p192, %p193
      %p195 = scmp.ne.s32.totalorder %s183, %s184
      %p196 = scmp.eq.s32.totalorder %s27, 1
      %p197 = por %p195, %p196
      %p199 = scmp.ne.s32.totalorder %s184, %s198
      %p200 = scmp.eq.s32.totalorder %s27, 0
      %p201 = por %p199, %p200
      %s203 = sadd.s32 %s202, 1
      %p206 = scmp.eq.s32.totalorder %s21, 1
      %p207 = scmp.ne.s32.totalorder %s202, %s204
      %p208 = scmp.eq.s32.totalorder %s21, 0
      %p209 = por %p207, %p208
      %p210 = scmp.ne.s32.totalorder %s202, %s204
      %p211 = scmp.eq.s32.totalorder %s26, 1
      %p212 = por %p210, %p211
      %p213 = scmp.ne.s32.totalorder %s204, %s205
      %p214 = scmp.eq.s32.totalorder %s26, 0
      %p215 = por %p213, %p214
      %p216 = scmp.ne.s32.totalorder %s204, %s205
      %p217 = scmp.eq.s32.totalorder %s27, 1
      %p218 = por %p216, %p217
      %p220 = scmp.ne.s32.totalorder %s205, %s219
      %p221 = scmp.eq.s32.totalorder %s27, 0
      %p222 = por %p220, %p221
      %s224 = sadd.s32 %s223, 1
      %p227 = scmp.eq.s32.totalorder %s21, 1
      %p228 = scmp.ne.s32.totalorder %s223, %s225
      %p229 = scmp.eq.s32.totalorder %s21, 0
      %p230 = por %p228, %p229
      %p231 = scmp.ne.s32.totalorder %s223, %s225
      %p232 = scmp.eq.s32.totalorder %s26, 1
      %p233 = por %p231, %p232
      %p234 = scmp.ne.s32.totalorder %s225, %s226
      %p235 = scmp.eq.s32.totalorder %s26, 0
      %p236 = por %p234, %p235
      %p237 = scmp.ne.s32.totalorder %s225, %s226
      %p238 = scmp.eq.s32.totalorder %s27, 1
      %p239 = por %p237, %p238
      %p241 = scmp.ne.s32.totalorder %s226, %s240
      %p242 = scmp.eq.s32.totalorder %s27, 0
      %p243 = por %p241, %p242
      %s245 = sadd.s32 %s244, 1
      %p248 = scmp.eq.s32.totalorder %s21, 1
      %p249 = scmp.ne.s32.totalorder %s244, %s246
      %p250 = scmp.eq.s32.totalorder %s21, 0
      %p251 = por %p249, %p250
      %p252 = scmp.ne.s32.totalorder %s244, %s246
      %p253 = scmp.eq.s32.totalorder %s26, 1
      %p254 = por %p252, %p253
      %p255 = scmp.ne.s32.totalorder %s246, %s247
      %p256 = scmp.eq.s32.totalorder %s26, 0
      %p257 = por %p255, %p256
      %p258 = scmp.ne.s32.totalorder %s246, %s247
      %p259 = scmp.eq.s32.totalorder %s27, 1
      %p260 = por %p258, %p259
      %p262 = scmp.ne.s32.totalorder %s247, %s261
      %p263 = scmp.eq.s32.totalorder %s27, 0
      %p264 = por %p262, %p263
      %s266 = sadd.s32 %s265, 1
      %p269 = scmp.eq.s32.totalorder %s21, 1
      %p270 = scmp.ne.s32.totalorder %s265, %s267
      %p271 = scmp.eq.s32.totalorder %s21, 0
      %p272 = por %p270, %p271
      %p273 = scmp.ne.s32.totalorder %s265, %s267
      %p274 = scmp.eq.s32.totalorder %s26, 1
      %p275 = por %p273, %p274
      %p276 = scmp.ne.s32.totalorder %s267, %s268
      %p277 = scmp.eq.s32.totalorder %s26, 0
      %p278 = por %p276, %p277
      %p279 = scmp.ne.s32.totalorder %s267, %s268
      %p280 = scmp.eq.s32.totalorder %s27, 1
      %p281 = por %p279, %p280
      %p283 = scmp.ne.s32.totalorder %s268, %s282
      %p284 = scmp.eq.s32.totalorder %s27, 0
      %p285 = por %p283, %p284
      %p286 = scmp.le.s32.totalorder 1, %s21
      %p287 = scmp.lt.s32.totalorder %s21, 3
      %p288 = pnand %p286, %p287
      %p289 = pneg %p288
      // Predicated region
      $region9: #{discriminator_forward.1} parent=5 // pred_check
        _
      $region10: #{discriminator_forward.1} parent=5 // pred_check_branch
        %291 = sbr.rel (%p288) target = $region12
      $region11: #{discriminator_forward.1} parent=5 // pred_region
        %s292 = ssub.s32 %s21, 1
        // Predicated region
        $region13: #{discriminator_forward.1} parent=11 // pred_check
          %p293 = pneg %p42
        $region14: #{discriminator_forward.1} parent=11 // pred_check_branch
          %295 = sbr.rel (%p293) target = $region16
        $region15: #{discriminator_forward.1} parent=11 // pred_region
          _
        $region16: #{discriminator_forward.1} parent=11 // pred_fallthru
          _
        // Predicated region
        $region17: #{discriminator_forward.1} parent=11 // pred_check
          %p296 = pneg %p89
        $region18: #{discriminator_forward.1} parent=11 // pred_check_branch
          %298 = sbr.rel (%p296) target = $region20
        $region19: #{discriminator_forward.1} parent=11 // pred_region
          _
        $region20: #{discriminator_forward.1} parent=11 // pred_fallthru
          _
        // Predicated region
        $region21: #{discriminator_forward.1} parent=11 // pred_check
          %p299 = pneg %p110
        $region22: #{discriminator_forward.1} parent=11 // pred_check_branch
          %301 = sbr.rel (%p299) target = $region24
        $region23: #{discriminator_forward.1} parent=11 // pred_region
          %s303 = ssub.s32 12288, 12288
          %304 = vsyncadd [#allocation5], %s303
          %s305 = sshll.u32 [#allocation4], 4
          %s306 = int_to_ptr.vmem [resolvable:$true] %s305
          %311 = dma.hbm_to_vmem [thread:$0]  %s3, 12288, %s306, [#allocation5], 384, 384, 24
        $region24: #{discriminator_forward.1} parent=11 // pred_fallthru
          _
        // Predicated region
        $region25: #{discriminator_forward.1} parent=11 // pred_check
          %p312 = pneg %p131
        $region26: #{discriminator_forward.1} parent=11 // pred_check_branch
          %314 = sbr.rel (%p312) target = $region28
        $region27: #{discriminator_forward.1} parent=11 // pred_region
          %s316 = ssub.s32 96, 96
          %317 = vsyncadd [#allocation7], %s316
          %s319 = sshll.u32 [#allocation6], 4
          %s320 = int_to_ptr.vmem [resolvable:$true] %s319
          %322 = dma.hbm_to_vmem [thread:$0]  %s4, 96, %s320, [#allocation7]
        $region28: #{discriminator_forward.1} parent=11 // pred_fallthru
          _
        // Predicated region
        $region29: #{discriminator_forward.1} parent=11 // pred_check
          %p323 = pneg %p152
        $region30: #{discriminator_forward.1} parent=11 // pred_check_branch
          %325 = sbr.rel (%p323) target = $region32
        $region31: #{discriminator_forward.1} parent=11 // pred_region
          %s327 = ssub.s32 4096, 4096
          %328 = vsyncadd [#allocation7], %s327
          %s329 = sshll.u32 [#allocation8], 4
          %s330 = int_to_ptr.vmem [resolvable:$true] %s329
          %335 = dma.hbm_to_vmem [thread:$0]  %s5, 4096, %s330, [#allocation7], 128, 128, 8
        $region32: #{discriminator_forward.1} parent=11 // pred_fallthru
          _
        // Predicated region
        $region33: #{discriminator_forward.1} parent=11 // pred_check
          %p336 = pneg %p173
        $region34: #{discriminator_forward.1} parent=11 // pred_check_branch
          %338 = sbr.rel (%p336) target = $region36
        $region35: #{discriminator_forward.1} parent=11 // pred_region
          _
        $region36: #{discriminator_forward.1} parent=11 // pred_fallthru
          _
        // Predicated region
        $region37: #{discriminator_forward.1} parent=11 // pred_check
          %p339 = pneg %p194
        $region38: #{discriminator_forward.1} parent=11 // pred_check_branch
          %341 = sbr.rel (%p339) target = $region40
        $region39: #{discriminator_forward.1} parent=11 // pred_region
          %s343 = ssub.s32 2048, 2048
          %344 = vsyncadd [#allocation10], %s343
          %s345 = sshll.u32 [#allocation9], 4
          %s346 = int_to_ptr.vmem [resolvable:$true] %s345
          %351 = dma.hbm_to_vmem [thread:$0]  %s7, 2048, %s346, [#allocation10], 64, 64, 4
        $region40: #{discriminator_forward.1} parent=11 // pred_fallthru
          _
        // Predicated region
        $region41: #{discriminator_forward.1} parent=11 // pred_check
          %p352 = pneg %p215
        $region42: #{discriminator_forward.1} parent=11 // pred_check_branch
          %354 = sbr.rel (%p352) target = $region44
        $region43: #{discriminator_forward.1} parent=11 // pred_region
          %s356 = ssub.s32 16, 16
          %357 = vsyncadd [#allocation10], %s356
          %s359 = sshll.u32 [#allocation11], 4
          %s360 = int_to_ptr.vmem [resolvable:$true] %s359
          %362 = dma.hbm_to_vmem [thread:$0]  %s8, 16, %s360, [#allocation10]
        $region44: #{discriminator_forward.1} parent=11 // pred_fallthru
          _
        // Predicated region
        $region45: #{discriminator_forward.1} parent=11 // pred_check
          %p363 = pneg %p236
        $region46: #{discriminator_forward.1} parent=11 // pred_check_branch
          %365 = sbr.rel (%p363) target = $region48
        $region47: #{discriminator_forward.1} parent=11 // pred_region
          _
        $region48: #{discriminator_forward.1} parent=11 // pred_fallthru
          _
        // Predicated region
        $region49: #{discriminator_forward.1} parent=11 // pred_check
          %p366 = pneg %p257
        $region50: #{discriminator_forward.1} parent=11 // pred_check_branch
          %368 = sbr.rel (%p366) target = $region52
        $region51: #{discriminator_forward.1} parent=11 // pred_region
          %s370 = ssub.s32 16, 16
          %371 = vsyncadd [#allocation13], %s370
          %s373 = sshll.u32 [#allocation12], 4
          %s374 = int_to_ptr.vmem [resolvable:$true] %s373
          %376 = dma.hbm_to_vmem [thread:$0]  %s10, 16, %s374, [#allocation13]
        $region52: #{discriminator_forward.1} parent=11 // pred_fallthru
          _
      $region12: #{discriminator_forward.1} parent=5 // pred_fallthru
        _
      %p377 = scmp.lt.s32.totalorder %s21, 2
      // Predicated region
      $region53: #{discriminator_forward.1} parent=5 // pred_check
        %p378 = pneg %p377
      $region54: #{discriminator_forward.1} parent=5 // pred_check_branch
        %380 = sbr.rel (%p378) target = $region56
      $region55: #{discriminator_forward.1} parent=5 // pred_region
        // Predicated region
        $region57: #{discriminator_forward.1} parent=55 // pred_check
          %p381 = pneg %p62
        $region58: #{discriminator_forward.1} parent=55 // pred_check_branch
          %383 = sbr.rel (%p381) target = $region60
        $region59: #{discriminator_forward.1} parent=55 // pred_region
          %s384 = smul.u32 4, %s21
          %p385 = scmp.lt.s32.totalorder %s384, 7
          %s386 = scalar_select %p385, %s384, 7
          %s387 = smul.addr %s386, 4
          %s388 = scalar_lea.vmem %s1, %s387
          %s389 = smul.u32 4, %s21
        $region60: #{discriminator_forward.1} parent=55 // pred_fallthru
          _
      $region56: #{discriminator_forward.1} parent=5 // pred_fallthru
        _
      %p390 = scmp.le.s32.totalorder 1, %s21
      %p391 = scmp.lt.s32.totalorder %s21, 3
      %p392 = pnand %p390, %p391
      %p393 = pneg %p392
      // Predicated region
      $region61: #{discriminator_forward.1} parent=5 // pred_check
        _
      $region62: #{discriminator_forward.1} parent=5 // pred_check_branch
        %395 = sbr.rel (%p392) target = $region64
      $region63: #{discriminator_forward.1} parent=5 // pred_region
        %s396 = ssub.s32 %s21, 1
        // Predicated region
        $region65: #{discriminator_forward.1} parent=63 // pred_check
          %p397 = pneg %p110
        $region66: #{discriminator_forward.1} parent=63 // pred_check_branch
          %399 = sbr.rel (%p397) target = $region68
        $region67: #{discriminator_forward.1} parent=63 // pred_region
          %400 = dma.done [#allocation5], 12288
        $region68: #{discriminator_forward.1} parent=63 // pred_fallthru
          _
        // Predicated region
        $region69: #{discriminator_forward.1} parent=63 // pred_check
          %p401 = pneg %p131
        $region70: #{discriminator_forward.1} parent=63 // pred_check_branch
          %403 = sbr.rel (%p401) target = $region72
        $region71: #{discriminator_forward.1} parent=63 // pred_region
          %404 = dma.done [#allocation7], 96
        $region72: #{discriminator_forward.1} parent=63 // pred_fallthru
          _
        // Predicated region
        $region73: #{discriminator_forward.1} parent=63 // pred_check
          %p405 = pneg %p152
        $region74: #{discriminator_forward.1} parent=63 // pred_check_branch
          %407 = sbr.rel (%p405) target = $region76
        $region75: #{discriminator_forward.1} parent=63 // pred_region
          %408 = dma.done [#allocation7], 4096
        $region76: #{discriminator_forward.1} parent=63 // pred_fallthru
          _
        // Predicated region
        $region77: #{discriminator_forward.1} parent=63 // pred_check
          %p409 = pneg %p194
        $region78: #{discriminator_forward.1} parent=63 // pred_check_branch
          %411 = sbr.rel (%p409) target = $region80
        $region79: #{discriminator_forward.1} parent=63 // pred_region
          %412 = dma.done [#allocation10], 2048
        $region80: #{discriminator_forward.1} parent=63 // pred_fallthru
          _
        // Predicated region
        $region81: #{discriminator_forward.1} parent=63 // pred_check
          %p413 = pneg %p215
        $region82: #{discriminator_forward.1} parent=63 // pred_check_branch
          %415 = sbr.rel (%p413) target = $region84
        $region83: #{discriminator_forward.1} parent=63 // pred_region
          %416 = dma.done [#allocation10], 16
        $region84: #{discriminator_forward.1} parent=63 // pred_fallthru
          _
        // Predicated region
        $region85: #{discriminator_forward.1} parent=63 // pred_check
          %p417 = pneg %p257
        $region86: #{discriminator_forward.1} parent=63 // pred_check_branch
          %419 = sbr.rel (%p417) target = $region88
        $region87: #{discriminator_forward.1} parent=63 // pred_region
          %420 = dma.done [#allocation13], 16
        $region88: #{discriminator_forward.1} parent=63 // pred_fallthru
          _
        %p421 = pneg %p42
        %p422 = pneg %p39
        %s423 = smul.u32 4, %s26
        %p424 = scmp.lt.s32.totalorder %s423, 7
        %s425 = scalar_select %p424, %s423, 7
        %s426 = smul.addr %s425, 4
        %s427 = scalar_lea.vmem %s1, %s426
        %p428 = pneg %p68
        %p429 = pneg %p65
        %p430 = pneg %p89
        %p431 = pneg %p86
        %p432 = pneg %p110
        %p433 = pneg %p107
        %p434 = pneg %p131
        %p435 = pneg %p128
        %p436 = pneg %p152
        %p437 = pneg %p149
        %p438 = pneg %p173
        %p439 = pneg %p170
        %p440 = pneg %p194
        %p441 = pneg %p191
        %p442 = pneg %p215
        %p443 = pneg %p212
        %p444 = pneg %p236
        %p445 = pneg %p233
        %p446 = pneg %p257
        %p447 = pneg %p254
        %p448 = pneg %p278
        %p449 = pneg %p275
        %s450 = smul.u32 4, %s26
        %p451 = scmp.lt.s32.totalorder %s450, 7
        %s452 = scalar_select %p451, %s450, 7
        %s453 = smul.addr %s452, 4
        %s454 = scalar_lea.vmem %s1, %s453
        %s455 = smul.u32 4, %s26
        %p457 = scmp.eq.s32.totalorder %s26, 0
        // Predicated region
        $region89: #{discriminator_forward.1} parent=63 // pred_check
          %p458 = pneg %p457
        $region90: #{discriminator_forward.1} parent=63 // pred_check_branch
          %460 = sbr.rel (%p458) target = $region92
        $region91: #{discriminator_forward.1} parent=63 // pred_region
          %461 = vst [vmem:[#allocation3] sm:$0xff] 0.0
          %462 = vst [vmem:[#allocation3 + $0x8] sm:$0xff] 0.0
        $region92: #{discriminator_forward.1} parent=63 // pred_fallthru
          _
        %v463 = vld [vmem:[%s454] sm:$0xf]
        %v464 = vld [vmem:[%s454 + $0x4] sm:$0xf]
        %v465 = vld [vmem:[%s454 + $0x8] sm:$0xf]
        %v466 = vld [vmem:[%s454 + $0xc] sm:$0xf]
        %v467 = vld [vmem:[%s2] sm:$0xff]
        %v468 = vld [vmem:[%s2 + $0x8] sm:$0xff]
        %v469 = vld [vmem:[%s2 + $0x10] sm:$0xff]
        %v470 = vld [vmem:[%s2 + $0x18] sm:$0x11]
        %v471 = vld [vmem:[%s2 + $0x20] sm:$0x11]
        %v472 = vld [vmem:[%s2 + $0x28] sm:$0x11]
        %v477 = vunpack.c.l.b16 %v463
        %v478 = vunpack.c.l.b16 %v464
        %v479 = vunpack.c.l.b16 %v465
        %v480 = vunpack.c.l.b16 %v466
        %v481 = vpack.c.b16 %v478, %v477
        %v482 = vpack.c.b16 %v480, %v479
        %v489 = vunpack.c.l.b16 %v467
        %v490 = vunpack.c.h.b16 %v467
        %v491 = vunpack.c.l.b16 %v468
        %v492 = vunpack.c.h.b16 %v468
        %v493 = vunpack.c.l.b16 %v469
        %v494 = vunpack.c.h.b16 %v469
        %v495 = vunpack.c.l.b16 %v470
        %v496 = vunpack.c.h.b16 %v470
        %v497 = vunpack.c.l.b16 %v471
        %v498 = vunpack.c.h.b16 %v471
        %v499 = vunpack.c.l.b16 %v472
        %v500 = vunpack.c.h.b16 %v472
        %v501 = vpack.c.b16 %v495, %v489
        %v502 = vpack.c.b16 %v496, %v490
        %v503 = vpack.c.b16 %v497, %v491
        %v504 = vpack.c.b16 %v498, %v492
        %v505 = vpack.c.b16 %v499, %v493
        %v506 = vpack.c.b16 %v500, %v494
        %vm507 = vcmask 72704
        %v509 = vsel %vm507, %v481, 0
        %v512 = vsel %vm507, %v482, 0
        %vm514 = vcmask 1043456
        %vm515 = vcmask 1044480
        %v516 = vsel %vm514, 4294967295, 65535
        %v517 = vsel %vm515, %v516, 0
        %v519 = vand.u32 %v501, %v517
        %v522 = vand.u32 %v502, %v517
        %v525 = vand.u32 %v503, %v517
        %v528 = vand.u32 %v504, %v517
        %v531 = vand.u32 %v505, %v517
        %v534 = vand.u32 %v506, %v517
        %536 = vmatprep.subr.bf16.mxu0 %v522
        %537 = vmatpush1.bf16.msra.mxu0 %v519
        %538 = vmatprep.subr.bf16.mxu0 0
        %539 = vmatpush1.bf16.msra.mxu0 0
        %540 = vmatprep.subr.bf16.mxu0 0
        %541 = vmatpush1.bf16.msra.mxu0 0
        %542 = vmatprep.subr.bf16.mxu0 0
        %543 = vmatpush1.bf16.msra.mxu0 0
        %544 = vmatprep.subr.bf16.mxu0 0
        %545 = vmatpush1.bf16.msra.mxu0 0
        %546 = vmatprep.subr.bf16.mxu0 0
        %547 = vmatpush1.bf16.msra.mxu0 0
        %548 = vmatprep.subr.bf16.mxu0 0
        %549 = vmatpush1.bf16.msra.mxu0 0
        %550 = vmatprep.subr.bf16.mxu0 0
        %551 = vmatpush1.bf16.msra.mxu0 0
        %552 = vmatprep.subr.bf16.mxu0 0
        %553 = vmatpush1.bf16.msra.mxu0 0
        %554 = vmatprep.subr.bf16.mxu0 0
        %555 = vmatpush1.bf16.msra.mxu0 0
        %556 = vmatprep.subr.bf16.mxu0 0
        %557 = vmatpush1.bf16.msra.mxu0 0
        %558 = vmatprep.subr.bf16.mxu0 0
        %559 = vmatpush1.bf16.msra.mxu0 0
        %560 = vmatprep.subr.bf16.mxu0 0
        %561 = vmatpush1.bf16.msra.mxu0 0
        %562 = vmatprep.subr.bf16.mxu0 0
        %563 = vmatpush1.bf16.msra.mxu0 0
        %564 = vmatprep.subr.bf16.mxu0 0
        %565 = vmatpush1.bf16.msra.mxu0 0
        %566 = vmatprep.subr.bf16.mxu0 0
        %567 = vmatpush1.bf16.msra.mxu0 0
        %568 = vmatprep.mubr.bf16.mxu0 0
        %569 = vmatmul.mubr.bf16.gmra.mrb[0].mxu0 %v509
        %v570 = vpop.f32.mrb[0].mxu0
        %v571 = vadd.f32 0.0, %v570
        %v572 = vpop.f32.mrb[0].mxu0
        %v573 = vadd.f32 0.0, %v572
        %v574 = vpop.f32.mrb[0].mxu0
        %v575 = vadd.f32 0.0, %v574
        %v576 = vpop.f32.mrb[0].mxu0
        %v577 = vadd.f32 0.0, %v576
        %578 = vmatprep.mubr.bf16.mxu0 0
        %579 = vmatmul.mubr.bf16.gmra.mrb[0].mxu0 %v512
        %v580 = vpop.f32.mrb[0].mxu0
        %v581 = vadd.f32 0.0, %v580
        %v582 = vpop.f32.mrb[0].mxu0
        %v583 = vadd.f32 0.0, %v582
        %v584 = vpop.f32.mrb[0].mxu0
        %v585 = vadd.f32 0.0, %v584
        %v586 = vpop.f32.mrb[0].mxu0
        %v587 = vadd.f32 0.0, %v586
        %588 = vdwg.mxu0
        %589 = vmatprep.subr.bf16.mxu0 %v528
        %590 = vmatpush1.bf16.msra.mxu0 %v525
        %591 = vmatprep.subr.bf16.mxu0 0
        %592 = vmatpush1.bf16.msra.mxu0 0
        %593 = vmatprep.subr.bf16.mxu0 0
        %594 = vmatpush1.bf16.msra.mxu0 0
        %595 = vmatprep.subr.bf16.mxu0 0
        %596 = vmatpush1.bf16.msra.mxu0 0
        %597 = vmatprep.subr.bf16.mxu0 0
        %598 = vmatpush1.bf16.msra.mxu0 0
        %599 = vmatprep.subr.bf16.mxu0 0
        %600 = vmatpush1.bf16.msra.mxu0 0
        %601 = vmatprep.subr.bf16.mxu0 0
        %602 = vmatpush1.bf16.msra.mxu0 0
        %603 = vmatprep.subr.bf16.mxu0 0
        %604 = vmatpush1.bf16.msra.mxu0 0
        %605 = vmatprep.subr.bf16.mxu0 0
        %606 = vmatpush1.bf16.msra.mxu0 0
        %607 = vmatprep.subr.bf16.mxu0 0
        %608 = vmatpush1.bf16.msra.mxu0 0
        %609 = vmatprep.subr.bf16.mxu0 0
        %610 = vmatpush1.bf16.msra.mxu0 0
        %611 = vmatprep.subr.bf16.mxu0 0
        %612 = vmatpush1.bf16.msra.mxu0 0
        %613 = vmatprep.subr.bf16.mxu0 0
        %614 = vmatpush1.bf16.msra.mxu0 0
        %615 = vmatprep.subr.bf16.mxu0 0
        %616 = vmatpush1.bf16.msra.mxu0 0
        %617 = vmatprep.subr.bf16.mxu0 0
        %618 = vmatpush1.bf16.msra.mxu0 0
        %619 = vmatprep.subr.bf16.mxu0 0
        %620 = vmatpush1.bf16.msra.mxu0 0
        %621 = vmatprep.mubr.bf16.mxu0 0
        %622 = vmatmul.mubr.bf16.gmra.mrb[0].mxu0 %v509
        %v623 = vpop.f32.mrb[0].mxu0
        %v624 = vadd.f32 0.0, %v623
        %v625 = vpop.f32.mrb[0].mxu0
        %v626 = vadd.f32 0.0, %v625
        %v627 = vpop.f32.mrb[0].mxu0
        %v628 = vadd.f32 0.0, %v627
        %v629 = vpop.f32.mrb[0].mxu0
        %v630 = vadd.f32 0.0, %v629
        %631 = vmatprep.mubr.bf16.mxu0 0
        %632 = vmatmul.mubr.bf16.gmra.mrb[0].mxu0 %v512
        %v633 = vpop.f32.mrb[0].mxu0
        %v634 = vadd.f32 0.0, %v633
        %v635 = vpop.f32.mrb[0].mxu0
        %v636 = vadd.f32 0.0, %v635
        %v637 = vpop.f32.mrb[0].mxu0
        %v638 = vadd.f32 0.0, %v637
        %v639 = vpop.f32.mrb[0].mxu0
        %v640 = vadd.f32 0.0, %v639
        %641 = vdwg.mxu0
        %642 = vmatprep.subr.bf16.mxu0 %v534
        %643 = vmatpush1.bf16.msra.mxu0 %v531
        %644 = vmatprep.subr.bf16.mxu0 0
        %645 = vmatpush1.bf16.msra.mxu0 0
        %646 = vmatprep.subr.bf16.mxu0 0
        %647 = vmatpush1.bf16.msra.mxu0 0
        %648 = vmatprep.subr.bf16.mxu0 0
        %649 = vmatpush1.bf16.msra.mxu0 0
        %650 = vmatprep.subr.bf16.mxu0 0
        %651 = vmatpush1.bf16.msra.mxu0 0
        %652 = vmatprep.subr.bf16.mxu0 0
        %653 = vmatpush1.bf16.msra.mxu0 0
        %654 = vmatprep.subr.bf16.mxu0 0
        %655 = vmatpush1.bf16.msra.mxu0 0
        %656 = vmatprep.subr.bf16.mxu0 0
        %657 = vmatpush1.bf16.msra.mxu0 0
        %658 = vmatprep.subr.bf16.mxu0 0
        %659 = vmatpush1.bf16.msra.mxu0 0
        %660 = vmatprep.subr.bf16.mxu0 0
        %661 = vmatpush1.bf16.msra.mxu0 0
        %662 = vmatprep.subr.bf16.mxu0 0
        %663 = vmatpush1.bf16.msra.mxu0 0
        %664 = vmatprep.subr.bf16.mxu0 0
        %665 = vmatpush1.bf16.msra.mxu0 0
        %666 = vmatprep.subr.bf16.mxu0 0
        %667 = vmatpush1.bf16.msra.mxu0 0
        %668 = vmatprep.subr.bf16.mxu0 0
        %669 = vmatpush1.bf16.msra.mxu0 0
        %670 = vmatprep.subr.bf16.mxu0 0
        %671 = vmatpush1.bf16.msra.mxu0 0
        %672 = vmatprep.subr.bf16.mxu0 0
        %673 = vmatpush1.bf16.msra.mxu0 0
        %674 = vmatprep.mubr.bf16.mxu0 0
        %675 = vmatmul.mubr.bf16.gmra.mrb[0].mxu0 %v509
        %v676 = vpop.f32.mrb[0].mxu0
        %v677 = vadd.f32 0.0, %v676
        %v678 = vpop.f32.mrb[0].mxu0
        %v679 = vadd.f32 0.0, %v678
        %v680 = vpop.f32.mrb[0].mxu0
        %v681 = vadd.f32 0.0, %v680
        %v682 = vpop.f32.mrb[0].mxu0
        %v683 = vadd.f32 0.0, %v682
        %684 = vmatprep.mubr.bf16.mxu0 0
        %685 = vmatmul.mubr.bf16.gmra.mrb[0].mxu0 %v512
        %v686 = vpop.f32.mrb[0].mxu0
        %v687 = vadd.f32 0.0, %v686
        %v688 = vpop.f32.mrb[0].mxu0
        %v689 = vadd.f32 0.0, %v688
        %v690 = vpop.f32.mrb[0].mxu0
        %v691 = vadd.f32 0.0, %v690
        %v692 = vpop.f32.mrb[0].mxu0
        %v693 = vadd.f32 0.0, %v692
        %694 = vdwg.mxu0
        %v695 = vpack.c.bf16 %v571, %v571
        %v696 = vpack.c.bf16 %v573, %v573
        %v697 = vpack.c.bf16 %v624, %v624
        %v698 = vpack.c.bf16 %v626, %v626
        %v699 = vpack.c.bf16 %v677, %v677
        %v700 = vpack.c.bf16 %v679, %v679
        %v707 = vunpack.c.l.b16 %v695
        %v708 = vunpack.c.l.b16 %v696
        %v709 = vunpack.c.l.b16 %v697
        %v710 = vunpack.c.l.b16 %v698
        %v711 = vunpack.c.l.b16 %v699
        %v712 = vunpack.c.l.b16 %v700
        %v713 = vpack.c.b16 %v708, %v707
        %v714 = vpack.c.b16 %v710, %v709
        %v715 = vpack.c.b16 %v712, %v711
        %719 = vst [vmem:[#allocation2] sm:$0xff] %v713
        %720 = vst [vmem:[#allocation2 + $0x8] sm:$0xff] %v714
        %721 = vst [vmem:[#allocation2 + $0x10] sm:$0xff] %v715
        %v722 = vpack.c.bf16 %v575, %v575
        %v723 = vpack.c.bf16 %v577, %v577
        %v724 = vpack.c.bf16 %v628, %v628
        %v725 = vpack.c.bf16 %v630, %v630
        %v726 = vpack.c.bf16 %v681, %v681
        %v727 = vpack.c.bf16 %v683, %v683
        %v734 = vunpack.c.l.b16 %v722
        %v735 = vunpack.c.l.b16 %v723
        %v736 = vunpack.c.l.b16 %v724
        %v737 = vunpack.c.l.b16 %v725
        %v738 = vunpack.c.l.b16 %v726
        %v739 = vunpack.c.l.b16 %v727
        %v740 = vpack.c.b16 %v735, %v734
        %v741 = vpack.c.b16 %v737, %v736
        %v742 = vpack.c.b16 %v739, %v738
        %s746 = scalar_lea.vmem [#allocation2], 24
        %747 = vst [vmem:[%s746] sm:$0xff] %v740
        %748 = vst [vmem:[%s746 + $0x8] sm:$0xff] %v741
        %749 = vst [vmem:[%s746 + $0x10] sm:$0xff] %v742
        %v750 = vpack.c.bf16 %v581, %v581
        %v751 = vpack.c.bf16 %v583, %v583
        %v752 = vpack.c.bf16 %v634, %v634
        %v753 = vpack.c.bf16 %v636, %v636
        %v754 = vpack.c.bf16 %v687, %v687
        %v755 = vpack.c.bf16 %v689, %v689
        %v762 = vunpack.c.l.b16 %v750
        %v763 = vunpack.c.l.b16 %v751
        %v764 = vunpack.c.l.b16 %v752
        %v765 = vunpack.c.l.b16 %v753
        %v766 = vunpack.c.l.b16 %v754
        %v767 = vunpack.c.l.b16 %v755
        %v768 = vpack.c.b16 %v763, %v762
        %v769 = vpack.c.b16 %v765, %v764
        %v770 = vpack.c.b16 %v767, %v766
        %s774 = scalar_lea.vmem [#allocation2], 48
        %775 = vst [vmem:[%s774] sm:$0xff] %v768
        %776 = vst [vmem:[%s774 + $0x8] sm:$0xff] %v769
        %777 = vst [vmem:[%s774 + $0x10] sm:$0xff] %v770
        %v778 = vpack.c.bf16 %v585, %v585
        %v779 = vpack.c.bf16 %v587, %v587
        %v780 = vpack.c.bf16 %v638, %v638
        %v781 = vpack.c.bf16 %v640, %v640
        %v782 = vpack.c.bf16 %v691, %v691
        %v783 = vpack.c.bf16 %v693, %v693
        %v790 = vunpack.c.l.b16 %v778
        %v791 = vunpack.c.l.b16 %v779
        %v792 = vunpack.c.l.b16 %v780
        %v793 = vunpack.c.l.b16 %v781
        %v794 = vunpack.c.l.b16 %v782
        %v795 = vunpack.c.l.b16 %v783
        %v796 = vpack.c.b16 %v791, %v790
        %v797 = vpack.c.b16 %v793, %v792
        %v798 = vpack.c.b16 %v795, %v794
        %s802 = scalar_lea.vmem [#allocation2], 72
        %803 = vst [vmem:[%s802] sm:$0xff] %v796
        %804 = vst [vmem:[%s802 + $0x8] sm:$0xff] %v797
        %805 = vst [vmem:[%s802 + $0x10] sm:$0xff] %v798
        %v806 = vld [vmem:[#allocation4] sm:$0xff]
        %v807 = vld [vmem:[#allocation4 + $0x8] sm:$0xff]
        %v808 = vld [vmem:[#allocation4 + $0x10] sm:$0xff]
        %v809 = vld [vmem:[#allocation4 + $0x18] sm:$0xff]
        %v810 = vld [vmem:[#allocation4 + $0x20] sm:$0xff]
        %v811 = vld [vmem:[#allocation4 + $0x28] sm:$0xff]
        %v812 = vld [vmem:[#allocation4 + $0x30] sm:$0xff]
        %v813 = vld [vmem:[#allocation4 + $0x38] sm:$0xff]
        %v814 = vld [vmem:[#allocation4 + $0x40] sm:$0xff]
        %v815 = vld [vmem:[#allocation4 + $0x48] sm:$0xff]
        %v816 = vld [vmem:[#allocation4 + $0x50] sm:$0xff]
        %v817 = vld [vmem:[#allocation4 + $0x58] sm:$0xff]
        %v818 = vld [vmem:[#allocation4 + $0x60] sm:$0xff]
        %v819 = vld [vmem:[#allocation4 + $0x68] sm:$0xff]
        %v820 = vld [vmem:[#allocation4 + $0x70] sm:$0xff]
        %v821 = vld [vmem:[#allocation4 + $0x78] sm:$0xff]
        %v822 = vld [vmem:[#allocation4 + $0x80] sm:$0xff]
        %v823 = vld [vmem:[#allocation4 + $0x88] sm:$0xff]
        %v824 = vld [vmem:[#allocation4 + $0x90] sm:$0xff]
        %v825 = vld [vmem:[#allocation4 + $0x98] sm:$0xff]
        %v826 = vld [vmem:[#allocation4 + $0xa0] sm:$0xff]
        %v827 = vld [vmem:[#allocation4 + $0xa8] sm:$0xff]
        %v828 = vld [vmem:[#allocation4 + $0xb0] sm:$0xff]
        %v829 = vld [vmem:[#allocation4 + $0xb8] sm:$0xff]
        %v830 = vld [vmem:[#allocation4 + $0xc0] sm:$0xff]
        %v831 = vld [vmem:[#allocation4 + $0xc8] sm:$0xff]
        %v832 = vld [vmem:[#allocation4 + $0xd0] sm:$0xff]
        %v833 = vld [vmem:[#allocation4 + $0xd8] sm:$0xff]
        %v834 = vld [vmem:[#allocation4 + $0xe0] sm:$0xff]
        %v835 = vld [vmem:[#allocation4 + $0xe8] sm:$0xff]
        %v836 = vld [vmem:[#allocation4 + $0xf0] sm:$0xff]
        %v837 = vld [vmem:[#allocation4 + $0xf8] sm:$0xff]
        %v838 = vld [vmem:[#allocation4 + $0x100] sm:$0xff]
        %v839 = vld [vmem:[#allocation4 + $0x108] sm:$0xff]
        %v840 = vld [vmem:[#allocation4 + $0x110] sm:$0xff]
        %v841 = vld [vmem:[#allocation4 + $0x118] sm:$0xff]
        %v842 = vld [vmem:[#allocation4 + $0x120] sm:$0xff]
        %v843 = vld [vmem:[#allocation4 + $0x128] sm:$0xff]
        %v844 = vld [vmem:[#allocation4 + $0x130] sm:$0xff]
        %v845 = vld [vmem:[#allocation4 + $0x138] sm:$0xff]
        %v846 = vld [vmem:[#allocation4 + $0x140] sm:$0xff]
        %v847 = vld [vmem:[#allocation4 + $0x148] sm:$0xff]
        %v848 = vld [vmem:[#allocation4 + $0x150] sm:$0xff]
        %v849 = vld [vmem:[#allocation4 + $0x158] sm:$0xff]
        %v850 = vld [vmem:[#allocation4 + $0x160] sm:$0xff]
        %v851 = vld [vmem:[#allocation4 + $0x168] sm:$0xff]
        %v852 = vld [vmem:[#allocation4 + $0x170] sm:$0xff]
        %v853 = vld [vmem:[#allocation4 + $0x178] sm:$0xff]
        %v854 = vld [vmem:[#allocation4 + $0x180] sm:$0xff]
        %v855 = vld [vmem:[#allocation4 + $0x188] sm:$0xff]
        %v856 = vld [vmem:[#allocation4 + $0x190] sm:$0xff]
        %v857 = vld [vmem:[#allocation4 + $0x198] sm:$0xff]
        %v858 = vld [vmem:[#allocation4 + $0x1a0] sm:$0xff]
        %v859 = vld [vmem:[#allocation4 + $0x1a8] sm:$0xff]
        %v860 = vld [vmem:[#allocation4 + $0x1b0] sm:$0xff]
        %v861 = vld [vmem:[#allocation4 + $0x1b8] sm:$0xff]
        %v862 = vld [vmem:[#allocation4 + $0x1c0] sm:$0xff]
        %v863 = vld [vmem:[#allocation4 + $0x1c8] sm:$0xff]
        %v864 = vld [vmem:[#allocation4 + $0x1d0] sm:$0xff]
        %v865 = vld [vmem:[#allocation4 + $0x1d8] sm:$0xff]
        %v866 = vld [vmem:[#allocation4 + $0x1e0] sm:$0xff]
        %v867 = vld [vmem:[#allocation4 + $0x1e8] sm:$0xff]
        %v868 = vld [vmem:[#allocation4 + $0x1f0] sm:$0xff]
        %v869 = vld [vmem:[#allocation4 + $0x1f8] sm:$0xff]
        %v870 = vld [vmem:[#allocation4 + $0x200] sm:$0xff]
        %v871 = vld [vmem:[#allocation4 + $0x208] sm:$0xff]
        %v872 = vld [vmem:[#allocation4 + $0x210] sm:$0xff]
        %v873 = vld [vmem:[#allocation4 + $0x218] sm:$0xff]
        %v874 = vld [vmem:[#allocation4 + $0x220] sm:$0xff]
        %v875 = vld [vmem:[#allocation4 + $0x228] sm:$0xff]
        %v876 = vld [vmem:[#allocation4 + $0x230] sm:$0xff]
        %v877 = vld [vmem:[#allocation4 + $0x238] sm:$0xff]
        %v878 = vld [vmem:[#allocation4 + $0x240] sm:$0xff]
        %v879 = vld [vmem:[#allocation4 + $0x248] sm:$0xff]
        %v880 = vld [vmem:[#allocation4 + $0x250] sm:$0xff]
        %v881 = vld [vmem:[#allocation4 + $0x258] sm:$0xff]
        %v882 = vld [vmem:[#allocation4 + $0x260] sm:$0xff]
        %v883 = vld [vmem:[#allocation4 + $0x268] sm:$0xff]
        %v884 = vld [vmem:[#allocation4 + $0x270] sm:$0xff]
        %v885 = vld [vmem:[#allocation4 + $0x278] sm:$0xff]
        %v886 = vld [vmem:[#allocation4 + $0x280] sm:$0xff]
        %v887 = vld [vmem:[#allocation4 + $0x288] sm:$0xff]
        %v888 = vld [vmem:[#allocation4 + $0x290] sm:$0xff]
        %v889 = vld [vmem:[#allocation4 + $0x298] sm:$0xff]
        %v890 = vld [vmem:[#allocation4 + $0x2a0] sm:$0xff]
        %v891 = vld [vmem:[#allocation4 + $0x2a8] sm:$0xff]
        %v892 = vld [vmem:[#allocation4 + $0x2b0] sm:$0xff]
        %v893 = vld [vmem:[#allocation4 + $0x2b8] sm:$0xff]
        %v894 = vld [vmem:[#allocation4 + $0x2c0] sm:$0xff]
        %v895 = vld [vmem:[#allocation4 + $0x2c8] sm:$0xff]
        %v896 = vld [vmem:[#allocation4 + $0x2d0] sm:$0xff]
        %v897 = vld [vmem:[#allocation4 + $0x2d8] sm:$0xff]
        %v898 = vld [vmem:[#allocation4 + $0x2e0] sm:$0xff]
        %v899 = vld [vmem:[#allocation4 + $0x2e8] sm:$0xff]
        %v900 = vld [vmem:[#allocation4 + $0x2f0] sm:$0xff]
        %v901 = vld [vmem:[#allocation4 + $0x2f8] sm:$0xff]
        %v902 = vld [vmem:[#allocation6] sm:$0x3f]
        %v903 = vld [vmem:[%s0] sm:$0xff]
        %s904 = smul.u32 %s26, 4
        %v905 = vld [vmem:[#allocation3] sm:$0xff]
        %v906 = vld [vmem:[#allocation3 + $0x8] sm:$0xff]
        %v907 = vld [vmem:[#allocation2] sm:$0xff]
        %v908 = vld [vmem:[#allocation2 + $0x8] sm:$0xff]
        %v909 = vld [vmem:[#allocation2 + $0x10] sm:$0xff]
        %v910 = vunpack.c.l.bf16 %v907
        %v911 = vunpack.c.h.bf16 %v907
        %v912 = vunpack.c.l.bf16 %v908
        %v913 = vunpack.c.h.bf16 %v908
        %v914 = vunpack.c.l.bf16 %v909
        %v915 = vunpack.c.h.bf16 %v909
        %v916 = vpack.c.bf16 %v905, %v905
        %v917 = vpack.c.bf16 %v906, %v906
        %v919 = vlaneseq
        %v920 = vshrl.u32 %v919, 7
        %v921 = vsub.s32 0, %v920
        %v922 = vrot.slane %v902, %v921
        %v923 = vlaneseq
        %v924 = vshrl.u32 %v923, 7
        %v925 = vsub.s32 1, %v924
        %v926 = vrot.slane %v902, %v925
        %v927 = vlaneseq
        %v928 = vshrl.u32 %v927, 7
        %v929 = vsub.s32 2, %v928
        %v930 = vrot.slane %v902, %v929
        %v931 = vlaneseq
        %v932 = vshrl.u32 %v931, 7
        %v933 = vsub.s32 3, %v932
        %v934 = vrot.slane %v902, %v933
        %v935 = vlaneseq
        %v936 = vshrl.u32 %v935, 7
        %v937 = vsub.s32 4, %v936
        %v938 = vrot.slane %v902, %v937
        %v939 = vlaneseq
        %v940 = vshrl.u32 %v939, 7
        %v941 = vsub.s32 5, %v940
        %v942 = vrot.slane %v902, %v941
        %v1045 = vunpack.c.l.b16 %v806
        %v1046 = vunpack.c.h.b16 %v806
        %v1047 = vunpack.c.l.b16 %v807
        %v1048 = vunpack.c.h.b16 %v807
        %v1049 = vunpack.c.l.b16 %v808
        %v1050 = vunpack.c.h.b16 %v808
        %v1051 = vunpack.c.l.b16 %v809
        %v1052 = vunpack.c.h.b16 %v809
        %v1053 = vunpack.c.l.b16 %v810
        %v1054 = vunpack.c.h.b16 %v810
        %v1055 = vunpack.c.l.b16 %v811
        %v1056 = vunpack.c.h.b16 %v811
        %v1057 = vunpack.c.l.b16 %v812
        %v1058 = vunpack.c.h.b16 %v812
        %v1059 = vunpack.c.l.b16 %v813
        %v1060 = vunpack.c.h.b16 %v813
        %v1061 = vunpack.c.l.b16 %v814
        %v1062 = vunpack.c.h.b16 %v814
        %v1063 = vunpack.c.l.b16 %v815
        %v1064 = vunpack.c.h.b16 %v815
        %v1065 = vunpack.c.l.b16 %v816
        %v1066 = vunpack.c.h.b16 %v816
        %v1067 = vunpack.c.l.b16 %v817
        %v1068 = vunpack.c.h.b16 %v817
        %v1069 = vunpack.c.l.b16 %v818
        %v1070 = vunpack.c.h.b16 %v818
        %v1071 = vunpack.c.l.b16 %v819
        %v1072 = vunpack.c.h.b16 %v819
        %v1073 = vunpack.c.l.b16 %v820
        %v1074 = vunpack.c.h.b16 %v820
        %v1075 = vunpack.c.l.b16 %v821
        %v1076 = vunpack.c.h.b16 %v821
        %v1077 = vunpack.c.l.b16 %v822
        %v1078 = vunpack.c.h.b16 %v822
        %v1079 = vunpack.c.l.b16 %v823
        %v1080 = vunpack.c.h.b16 %v823
        %v1081 = vunpack.c.l.b16 %v824
        %v1082 = vunpack.c.h.b16 %v824
        %v1083 = vunpack.c.l.b16 %v825
        %v1084 = vunpack.c.h.b16 %v825
        %v1085 = vunpack.c.l.b16 %v826
        %v1086 = vunpack.c.h.b16 %v826
        %v1087 = vunpack.c.l.b16 %v827
        %v1088 = vunpack.c.h.b16 %v827
        %v1089 = vunpack.c.l.b16 %v828
        %v1090 = vunpack.c.h.b16 %v828
        %v1091 = vunpack.c.l.b16 %v829
        %v1092 = vunpack.c.h.b16 %v829
        %v1093 = vunpack.c.l.b16 %v830
        %v1094 = vunpack.c.h.b16 %v830
        %v1095 = vunpack.c.l.b16 %v831
        %v1096 = vunpack.c.h.b16 %v831
        %v1097 = vunpack.c.l.b16 %v832
        %v1098 = vunpack.c.h.b16 %v832
        %v1099 = vunpack.c.l.b16 %v833
        %v1100 = vunpack.c.h.b16 %v833
        %v1101 = vunpack.c.l.b16 %v834
        %v1102 = vunpack.c.h.b16 %v834
        %v1103 = vunpack.c.l.b16 %v835
        %v1104 = vunpack.c.h.b16 %v835
        %v1105 = vunpack.c.l.b16 %v836
        %v1106 = vunpack.c.h.b16 %v836
        %v1107 = vunpack.c.l.b16 %v837
        %v1108 = vunpack.c.h.b16 %v837
        %v1109 = vunpack.c.l.b16 %v838
        %v1110 = vunpack.c.h.b16 %v838
        %v1111 = vunpack.c.l.b16 %v839
        %v1112 = vunpack.c.h.b16 %v839
        %v1113 = vunpack.c.l.b16 %v840
        %v1114 = vunpack.c.h.b16 %v840
        %v1115 = vunpack.c.l.b16 %v841
        %v1116 = vunpack.c.h.b16 %v841
        %v1117 = vunpack.c.l.b16 %v842
        %v1118 = vunpack.c.h.b16 %v842
        %v1119 = vunpack.c.l.b16 %v843
        %v1120 = vunpack.c.h.b16 %v843
        %v1121 = vunpack.c.l.b16 %v844
        %v1122 = vunpack.c.h.b16 %v844
        %v1123 = vunpack.c.l.b16 %v845
        %v1124 = vunpack.c.h.b16 %v845
        %v1125 = vunpack.c.l.b16 %v846
        %v1126 = vunpack.c.h.b16 %v846
        %v1127 = vunpack.c.l.b16 %v847
        %v1128 = vunpack.c.h.b16 %v847
        %v1129 = vunpack.c.l.b16 %v848
        %v1130 = vunpack.c.h.b16 %v848
        %v1131 = vunpack.c.l.b16 %v849
        %v1132 = vunpack.c.h.b16 %v849
        %v1133 = vunpack.c.l.b16 %v850
        %v1134 = vunpack.c.h.b16 %v850
        %v1135 = vunpack.c.l.b16 %v851
        %v1136 = vunpack.c.h.b16 %v851
        %v1137 = vunpack.c.l.b16 %v852
        %v1138 = vunpack.c.h.b16 %v852
        %v1139 = vunpack.c.l.b16 %v853
        %v1140 = vunpack.c.h.b16 %v853
        %v1141 = vunpack.c.l.b16 %v854
        %v1142 = vunpack.c.h.b16 %v854
        %v1143 = vunpack.c.l.b16 %v855
        %v1144 = vunpack.c.h.b16 %v855
        %v1145 = vunpack.c.l.b16 %v856
        %v1146 = vunpack.c.h.b16 %v856
        %v1147 = vunpack.c.l.b16 %v857
        %v1148 = vunpack.c.h.b16 %v857
        %v1149 = vunpack.c.l.b16 %v858
        %v1150 = vunpack.c.h.b16 %v858
        %v1151 = vunpack.c.l.b16 %v859
        %v1152 = vunpack.c.h.b16 %v859
        %v1153 = vunpack.c.l.b16 %v860
        %v1154 = vunpack.c.h.b16 %v860
        %v1155 = vunpack.c.l.b16 %v861
        %v1156 = vunpack.c.h.b16 %v861
        %v1157 = vunpack.c.l.b16 %v862
        %v1158 = vunpack.c.h.b16 %v862
        %v1159 = vunpack.c.l.b16 %v863
        %v1160 = vunpack.c.h.b16 %v863
        %v1161 = vunpack.c.l.b16 %v864
        %v1162 = vunpack.c.h.b16 %v864
        %v1163 = vunpack.c.l.b16 %v865
        %v1164 = vunpack.c.h.b16 %v865
        %v1165 = vunpack.c.l.b16 %v866
        %v1166 = vunpack.c.h.b16 %v866
        %v1167 = vunpack.c.l.b16 %v867
        %v1168 = vunpack.c.h.b16 %v867
        %v1169 = vunpack.c.l.b16 %v868
        %v1170 = vunpack.c.h.b16 %v868
        %v1171 = vunpack.c.l.b16 %v869
        %v1172 = vunpack.c.h.b16 %v869
        %v1173 = vunpack.c.l.b16 %v870
        %v1174 = vunpack.c.h.b16 %v870
        %v1175 = vunpack.c.l.b16 %v871
        %v1176 = vunpack.c.h.b16 %v871
        %v1177 = vunpack.c.l.b16 %v872
        %v1178 = vunpack.c.h.b16 %v872
        %v1179 = vunpack.c.l.b16 %v873
        %v1180 = vunpack.c.h.b16 %v873
        %v1181 = vunpack.c.l.b16 %v874
        %v1182 = vunpack.c.h.b16 %v874
        %v1183 = vunpack.c.l.b16 %v875
        %v1184 = vunpack.c.h.b16 %v875
        %v1185 = vunpack.c.l.b16 %v876
        %v1186 = vunpack.c.h.b16 %v876
        %v1187 = vunpack.c.l.b16 %v877
        %v1188 = vunpack.c.h.b16 %v877
        %v1189 = vunpack.c.l.b16 %v878
        %v1190 = vunpack.c.h.b16 %v878
        %v1191 = vunpack.c.l.b16 %v879
        %v1192 = vunpack.c.h.b16 %v879
        %v1193 = vunpack.c.l.b16 %v880
        %v1194 = vunpack.c.h.b16 %v880
        %v1195 = vunpack.c.l.b16 %v881
        %v1196 = vunpack.c.h.b16 %v881
        %v1197 = vunpack.c.l.b16 %v882
        %v1198 = vunpack.c.h.b16 %v882
        %v1199 = vunpack.c.l.b16 %v883
        %v1200 = vunpack.c.h.b16 %v883
        %v1201 = vunpack.c.l.b16 %v884
        %v1202 = vunpack.c.h.b16 %v884
        %v1203 = vunpack.c.l.b16 %v885
        %v1204 = vunpack.c.h.b16 %v885
        %v1205 = vunpack.c.l.b16 %v886
        %v1206 = vunpack.c.h.b16 %v886
        %v1207 = vunpack.c.l.b16 %v887
        %v1208 = vunpack.c.h.b16 %v887
        %v1209 = vunpack.c.l.b16 %v888
        %v1210 = vunpack.c.h.b16 %v888
        %v1211 = vunpack.c.l.b16 %v889
        %v1212 = vunpack.c.h.b16 %v889
        %v1213 = vunpack.c.l.b16 %v890
        %v1214 = vunpack.c.h.b16 %v890
        %v1215 = vunpack.c.l.b16 %v891
        %v1216 = vunpack.c.h.b16 %v891
        %v1217 = vunpack.c.l.b16 %v892
        %v1218 = vunpack.c.h.b16 %v892
        %v1219 = vunpack.c.l.b16 %v893
        %v1220 = vunpack.c.h.b16 %v893
        %v1221 = vunpack.c.l.b16 %v894
        %v1222 = vunpack.c.h.b16 %v894
        %v1223 = vunpack.c.l.b16 %v895
        %v1224 = vunpack.c.h.b16 %v895
        %v1225 = vunpack.c.l.b16 %v896
        %v1226 = vunpack.c.h.b16 %v896
        %v1227 = vunpack.c.l.b16 %v897
        %v1228 = vunpack.c.h.b16 %v897
        %v1229 = vunpack.c.l.b16 %v898
        %v1230 = vunpack.c.h.b16 %v898
        %v1231 = vunpack.c.l.b16 %v899
        %v1232 = vunpack.c.h.b16 %v899
        %v1233 = vunpack.c.l.b16 %v900
        %v1234 = vunpack.c.h.b16 %v900
        %v1235 = vunpack.c.l.b16 %v901
        %v1236 = vunpack.c.h.b16 %v901
        %v1237 = vpack.c.b16 %v1051, %v1045
        %v1238 = vpack.c.b16 %v1052, %v1046
        %v1239 = vpack.c.b16 %v1053, %v1047
        %v1240 = vpack.c.b16 %v1054, %v1048
        %v1241 = vpack.c.b16 %v1055, %v1049
        %v1242 = vpack.c.b16 %v1056, %v1050
        %v1243 = vpack.c.b16 %v1063, %v1057
        %v1244 = vpack.c.b16 %v1064, %v1058
        %v1245 = vpack.c.b16 %v1065, %v1059
        %v1246 = vpack.c.b16 %v1066, %v1060
        %v1247 = vpack.c.b16 %v1067, %v1061
        %v1248 = vpack.c.b16 %v1068, %v1062
        %v1249 = vpack.c.b16 %v1075, %v1069
        %v1250 = vpack.c.b16 %v1076, %v1070
        %v1251 = vpack.c.b16 %v1077, %v1071
        %v1252 = vpack.c.b16 %v1078, %v1072
        %v1253 = vpack.c.b16 %v1079, %v1073
        %v1254 = vpack.c.b16 %v1080, %v1074
        %v1255 = vpack.c.b16 %v1087, %v1081
        %v1256 = vpack.c.b16 %v1088, %v1082
        %v1257 = vpack.c.b16 %v1089, %v1083
        %v1258 = vpack.c.b16 %v1090, %v1084
        %v1259 = vpack.c.b16 %v1091, %v1085
        %v1260 = vpack.c.b16 %v1092, %v1086
        %v1261 = vpack.c.b16 %v1099, %v1093
        %v1262 = vpack.c.b16 %v1100, %v1094
        %v1263 = vpack.c.b16 %v1101, %v1095
        %v1264 = vpack.c.b16 %v1102, %v1096
        %v1265 = vpack.c.b16 %v1103, %v1097
        %v1266 = vpack.c.b16 %v1104, %v1098
        %v1267 = vpack.c.b16 %v1111, %v1105
        %v1268 = vpack.c.b16 %v1112, %v1106
        %v1269 = vpack.c.b16 %v1113, %v1107
        %v1270 = vpack.c.b16 %v1114, %v1108
        %v1271 = vpack.c.b16 %v1115, %v1109
        %v1272 = vpack.c.b16 %v1116, %v1110
        %v1273 = vpack.c.b16 %v1123, %v1117
        %v1274 = vpack.c.b16 %v1124, %v1118
        %v1275 = vpack.c.b16 %v1125, %v1119
        %v1276 = vpack.c.b16 %v1126, %v1120
        %v1277 = vpack.c.b16 %v1127, %v1121
        %v1278 = vpack.c.b16 %v1128, %v1122
        %v1279 = vpack.c.b16 %v1135, %v1129
        %v1280 = vpack.c.b16 %v1136, %v1130
        %v1281 = vpack.c.b16 %v1137, %v1131
        %v1282 = vpack.c.b16 %v1138, %v1132
        %v1283 = vpack.c.b16 %v1139, %v1133
        %v1284 = vpack.c.b16 %v1140, %v1134
        %v1285 = vpack.c.b16 %v1147, %v1141
        %v1286 = vpack.c.b16 %v1148, %v1142
        %v1287 = vpack.c.b16 %v1149, %v1143
        %v1288 = vpack.c.b16 %v1150, %v1144
        %v1289 = vpack.c.b16 %v1151, %v1145
        %v1290 = vpack.c.b16 %v1152, %v1146
        %v1291 = vpack.c.b16 %v1159, %v1153
        %v1292 = vpack.c.b16 %v1160, %v1154
        %v1293 = vpack.c.b16 %v1161, %v1155
        %v1294 = vpack.c.b16 %v1162, %v1156
        %v1295 = vpack.c.b16 %v1163, %v1157
        %v1296 = vpack.c.b16 %v1164, %v1158
        %v1297 = vpack.c.b16 %v1171, %v1165
        %v1298 = vpack.c.b16 %v1172, %v1166
        %v1299 = vpack.c.b16 %v1173, %v1167
        %v1300 = vpack.c.b16 %v1174, %v1168
        %v1301 = vpack.c.b16 %v1175, %v1169
        %v1302 = vpack.c.b16 %v1176, %v1170
        %v1303 = vpack.c.b16 %v1183, %v1177
        %v1304 = vpack.c.b16 %v1184, %v1178
        %v1305 = vpack.c.b16 %v1185, %v1179
        %v1306 = vpack.c.b16 %v1186, %v1180
        %v1307 = vpack.c.b16 %v1187, %v1181
        %v1308 = vpack.c.b16 %v1188, %v1182
        %v1309 = vpack.c.b16 %v1195, %v1189
        %v1310 = vpack.c.b16 %v1196, %v1190
        %v1311 = vpack.c.b16 %v1197, %v1191
        %v1312 = vpack.c.b16 %v1198, %v1192
        %v1313 = vpack.c.b16 %v1199, %v1193
        %v1314 = vpack.c.b16 %v1200, %v1194
        %v1315 = vpack.c.b16 %v1207, %v1201
        %v1316 = vpack.c.b16 %v1208, %v1202
        %v1317 = vpack.c.b16 %v1209, %v1203
        %v1318 = vpack.c.b16 %v1210, %v1204
        %v1319 = vpack.c.b16 %v1211, %v1205
        %v1320 = vpack.c.b16 %v1212, %v1206
        %v1321 = vpack.c.b16 %v1219, %v1213
        %v1322 = vpack.c.b16 %v1220, %v1214
        %v1323 = vpack.c.b16 %v1221, %v1215
        %v1324 = vpack.c.b16 %v1222, %v1216
        %v1325 = vpack.c.b16 %v1223, %v1217
        %v1326 = vpack.c.b16 %v1224, %v1218
        %v1327 = vpack.c.b16 %v1231, %v1225
        %v1328 = vpack.c.b16 %v1232, %v1226
        %v1329 = vpack.c.b16 %v1233, %v1227
        %v1330 = vpack.c.b16 %v1234, %v1228
        %v1331 = vpack.c.b16 %v1235, %v1229
        %v1332 = vpack.c.b16 %v1236, %v1230
        %1429 = vmatprep.subr.bf16.mxu0 %v1238
        %1430 = vmatpush1.bf16.msra.mxu0 %v1237
        %1431 = vmatprep.subr.bf16.mxu0 %v1244
        %1432 = vmatpush1.bf16.msra.mxu0 %v1243
        %1433 = vmatprep.subr.bf16.mxu0 %v1250
        %1434 = vmatpush1.bf16.msra.mxu0 %v1249
        %1435 = vmatprep.subr.bf16.mxu0 %v1256
        %1436 = vmatpush1.bf16.msra.mxu0 %v1255
        %1437 = vmatprep.subr.bf16.mxu0 %v1262
        %1438 = vmatpush1.bf16.msra.mxu0 %v1261
        %1439 = vmatprep.subr.bf16.mxu0 %v1268
        %1440 = vmatpush1.bf16.msra.mxu0 %v1267
        %1441 = vmatprep.subr.bf16.mxu0 %v1274
        %1442 = vmatpush1.bf16.msra.mxu0 %v1273
        %1443 = vmatprep.subr.bf16.mxu0 %v1280
        %1444 = vmatpush1.bf16.msra.mxu0 %v1279
        %1445 = vmatprep.subr.bf16.mxu0 %v1286
        %1446 = vmatpush1.bf16.msra.mxu0 %v1285
        %1447 = vmatprep.subr.bf16.mxu0 %v1292
        %1448 = vmatpush1.bf16.msra.mxu0 %v1291
        %1449 = vmatprep.subr.bf16.mxu0 %v1298
        %1450 = vmatpush1.bf16.msra.mxu0 %v1297
        %1451 = vmatprep.subr.bf16.mxu0 %v1304
        %1452 = vmatpush1.bf16.msra.mxu0 %v1303
        %1453 = vmatprep.subr.bf16.mxu0 %v1310
        %1454 = vmatpush1.bf16.msra.mxu0 %v1309
        %1455 = vmatprep.subr.bf16.mxu0 %v1316
        %1456 = vmatpush1.bf16.msra.mxu0 %v1315
        %1457 = vmatprep.subr.bf16.mxu0 %v1322
        %1458 = vmatpush1.bf16.msra.mxu0 %v1321
        %1459 = vmatprep.subr.bf16.mxu0 %v1328
        %1460 = vmatpush1.bf16.msra.mxu0 %v1327
        %1461 = vmatprep.mubr.bf16.mxu0 %v917
        %1462 = vmatmul.mubr.bf16.gmra.mrb[0].mxu0 %v916
        %v1463 = vpop.f32.mrb[0].mxu0
        %v1464 = vadd.f32 %v922, %v1463
        %v1465 = vpop.f32.mrb[0].mxu0
        %v1466 = vadd.f32 %v926, %v1465
        %v1467 = vpop.f32.mrb[0].mxu0
        %v1468 = vpop.f32.mrb[0].mxu0
        %1469 = vdwg.mxu0
        %1470 = vmatprep.subr.bf16.mxu0 %v1240
        %1471 = vmatpush1.bf16.msra.mxu0 %v1239
        %1472 = vmatprep.subr.bf16.mxu0 %v1246
        %1473 = vmatpush1.bf16.msra.mxu0 %v1245
        %1474 = vmatprep.subr.bf16.mxu0 %v1252
        %1475 = vmatpush1.bf16.msra.mxu0 %v1251
        %1476 = vmatprep.subr.bf16.mxu0 %v1258
        %1477 = vmatpush1.bf16.msra.mxu0 %v1257
        %1478 = vmatprep.subr.bf16.mxu0 %v1264
        %1479 = vmatpush1.bf16.msra.mxu0 %v1263
        %1480 = vmatprep.subr.bf16.mxu0 %v1270
        %1481 = vmatpush1.bf16.msra.mxu0 %v1269
        %1482 = vmatprep.subr.bf16.mxu0 %v1276
        %1483 = vmatpush1.bf16.msra.mxu0 %v1275
        %1484 = vmatprep.subr.bf16.mxu0 %v1282
        %1485 = vmatpush1.bf16.msra.mxu0 %v1281
        %1486 = vmatprep.subr.bf16.mxu0 %v1288
        %1487 = vmatpush1.bf16.msra.mxu0 %v1287
        %1488 = vmatprep.subr.bf16.mxu0 %v1294
        %1489 = vmatpush1.bf16.msra.mxu0 %v1293
        %1490 = vmatprep.subr.bf16.mxu0 %v1300
        %1491 = vmatpush1.bf16.msra.mxu0 %v1299
        %1492 = vmatprep.subr.bf16.mxu0 %v1306
        %1493 = vmatpush1.bf16.msra.mxu0 %v1305
        %1494 = vmatprep.subr.bf16.mxu0 %v1312
        %1495 = vmatpush1.bf16.msra.mxu0 %v1311
        %1496 = vmatprep.subr.bf16.mxu0 %v1318
        %1497 = vmatpush1.bf16.msra.mxu0 %v1317
        %1498 = vmatprep.subr.bf16.mxu0 %v1324
        %1499 = vmatpush1.bf16.msra.mxu0 %v1323
        %1500 = vmatprep.subr.bf16.mxu0 %v1330
        %1501 = vmatpush1.bf16.msra.mxu0 %v1329
        %1502 = vmatprep.mubr.bf16.mxu0 %v917
        %1503 = vmatmul.mubr.bf16.gmra.mrb[0].mxu0 %v916
        %v1504 = vpop.f32.mrb[0].mxu0
        %v1505 = vadd.f32 %v930, %v1504
        %v1506 = vpop.f32.mrb[0].mxu0
        %v1507 = vadd.f32 %v934, %v1506
        %v1508 = vpop.f32.mrb[0].mxu0
        %v1509 = vpop.f32.mrb[0].mxu0
        %1510 = vdwg.mxu0
        %1511 = vmatprep.subr.bf16.mxu0 %v1242
        %1512 = vmatpush1.bf16.msra.mxu0 %v1241
        %1513 = vmatprep.subr.bf16.mxu0 %v1248
        %1514 = vmatpush1.bf16.msra.mxu0 %v1247
        %1515 = vmatprep.subr.bf16.mxu0 %v1254
        %1516 = vmatpush1.bf16.msra.mxu0 %v1253
        %1517 = vmatprep.subr.bf16.mxu0 %v1260
        %1518 = vmatpush1.bf16.msra.mxu0 %v1259
        %1519 = vmatprep.subr.bf16.mxu0 %v1266
        %1520 = vmatpush1.bf16.msra.mxu0 %v1265
        %1521 = vmatprep.subr.bf16.mxu0 %v1272
        %1522 = vmatpush1.bf16.msra.mxu0 %v1271
        %1523 = vmatprep.subr.bf16.mxu0 %v1278
        %1524 = vmatpush1.bf16.msra.mxu0 %v1277
        %1525 = vmatprep.subr.bf16.mxu0 %v1284
        %1526 = vmatpush1.bf16.msra.mxu0 %v1283
        %1527 = vmatprep.subr.bf16.mxu0 %v1290
        %1528 = vmatpush1.bf16.msra.mxu0 %v1289
        %1529 = vmatprep.subr.bf16.mxu0 %v1296
        %1530 = vmatpush1.bf16.msra.mxu0 %v1295
        %1531 = vmatprep.subr.bf16.mxu0 %v1302
        %1532 = vmatpush1.bf16.msra.mxu0 %v1301
        %1533 = vmatprep.subr.bf16.mxu0 %v1308
        %1534 = vmatpush1.bf16.msra.mxu0 %v1307
        %1535 = vmatprep.subr.bf16.mxu0 %v1314
        %1536 = vmatpush1.bf16.msra.mxu0 %v1313
        %1537 = vmatprep.subr.bf16.mxu0 %v1320
        %1538 = vmatpush1.bf16.msra.mxu0 %v1319
        %1539 = vmatprep.subr.bf16.mxu0 %v1326
        %1540 = vmatpush1.bf16.msra.mxu0 %v1325
        %1541 = vmatprep.subr.bf16.mxu0 %v1332
        %1542 = vmatpush1.bf16.msra.mxu0 %v1331
        %1543 = vmatprep.mubr.bf16.mxu0 %v917
        %1544 = vmatmul.mubr.bf16.gmra.mrb[0].mxu0 %v916
        %v1545 = vpop.f32.mrb[0].mxu0
        %v1546 = vadd.f32 %v938, %v1545
        %v1547 = vpop.f32.mrb[0].mxu0
        %v1548 = vadd.f32 %v942, %v1547
        %v1549 = vpop.f32.mrb[0].mxu0
        %v1550 = vpop.f32.mrb[0].mxu0
        %1551 = vdwg.mxu0
        %v1552 = vadd.f32 %v910, %v1464
        %v1553 = vadd.f32 %v911, %v1466
        %v1554 = vadd.f32 %v912, %v1505
        %v1555 = vadd.f32 %v913, %v1507
        %v1556 = vmul.f32 %v1552, 0.5
        %v1557 = vmul.f32 %v1553, 0.5
        %v1558 = vtanh.pop %v1556
        %v1559 = vtanh.pop %v1557
        %v1560 = vadd.f32 %v1558, 1.0
        %v1561 = vadd.f32 %v1559, 1.0
        %v1562 = vmul.f32 %v1560, 0.5
        %v1563 = vmul.f32 %v1561, 0.5
        %v1564 = vmul.f32 %v1554, 0.5
        %v1565 = vmul.f32 %v1555, 0.5
        %v1566 = vtanh.pop %v1564
        %v1567 = vtanh.pop %v1565
        %v1568 = vadd.f32 %v1566, 1.0
        %v1569 = vadd.f32 %v1567, 1.0
        %v1570 = vmul.f32 %v1568, 0.5
        %v1571 = vmul.f32 %v1569, 0.5
        %v1572 = vmul.f32 %v1562, %v1546
        %v1573 = vmul.f32 %v1563, %v1548
        %v1574 = vadd.f32 %v914, %v1572
        %v1575 = vadd.f32 %v915, %v1573
        %v1576 = vtanh.pop %v1574
        %v1577 = vtanh.pop %v1575
        %v1578 = vsub.f32 1.0, %v1570
        %v1579 = vsub.f32 1.0, %v1571
        %v1580 = vmul.f32 %v1578, %v1576
        %v1581 = vmul.f32 %v1579, %v1577
        %v1582 = vmul.f32 %v1570, %v905
        %v1583 = vmul.f32 %v1571, %v906
        %v1584 = vadd.f32 %v1580, %v1582
        %v1585 = vadd.f32 %v1581, %v1583
        %v1586 = vstv %s904
        %vm1587 = vcmp.le.s32.totalorder %v1586, %v903
        %v1588 = vsel %vm1587, 1, 0
        %1589 = vset.pattern.permute.xlu0 0
        %1590 = vperm.xlu0 %1589, %v1588
        %v1591 = vpop.permute.xlu0 %1590
        %vm1592 = vcmp.eq.s32.totalorder %v1591, 1
        %v1593 = vsel %vm1592, %v1584, %v905
        %v1594 = vsel %vm1592, %v1585, %v906
        %v1595 = vld [vmem:[%s746] sm:$0xff]
        %v1596 = vld [vmem:[%s746 + $0x8] sm:$0xff]
        %v1597 = vld [vmem:[%s746 + $0x10] sm:$0xff]
        %v1598 = vunpack.c.l.bf16 %v1595
        %v1599 = vunpack.c.h.bf16 %v1595
        %v1600 = vunpack.c.l.bf16 %v1596
        %v1601 = vunpack.c.h.bf16 %v1596
        %v1602 = vunpack.c.l.bf16 %v1597
        %v1603 = vunpack.c.h.bf16 %v1597
        %v1604 = vpack.c.bf16 %v1593, %v1593
        %v1605 = vpack.c.bf16 %v1594, %v1594
        %1606 = vmatprep.subr.bf16.mxu0 %v1238
        %1607 = vmatpush1.bf16.msra.mxu0 %v1237
        %1608 = vmatprep.subr.bf16.mxu0 %v1244
        %1609 = vmatpush1.bf16.msra.mxu0 %v1243
        %1610 = vmatprep.subr.bf16.mxu0 %v1250
        %1611 = vmatpush1.bf16.msra.mxu0 %v1249
        %1612 = vmatprep.subr.bf16.mxu0 %v1256
        %1613 = vmatpush1.bf16.msra.mxu0 %v1255
        %1614 = vmatprep.subr.bf16.mxu0 %v1262
        %1615 = vmatpush1.bf16.msra.mxu0 %v1261
        %1616 = vmatprep.subr.bf16.mxu0 %v1268
        %1617 = vmatpush1.bf16.msra.mxu0 %v1267
        %1618 = vmatprep.subr.bf16.mxu0 %v1274
        %1619 = vmatpush1.bf16.msra.mxu0 %v1273
        %1620 = vmatprep.subr.bf16.mxu0 %v1280
        %1621 = vmatpush1.bf16.msra.mxu0 %v1279
        %1622 = vmatprep.subr.bf16.mxu0 %v1286
        %1623 = vmatpush1.bf16.msra.mxu0 %v1285
        %1624 = vmatprep.subr.bf16.mxu0 %v1292
        %1625 = vmatpush1.bf16.msra.mxu0 %v1291
        %1626 = vmatprep.subr.bf16.mxu0 %v1298
        %1627 = vmatpush1.bf16.msra.mxu0 %v1297
        %1628 = vmatprep.subr.bf16.mxu0 %v1304
        %1629 = vmatpush1.bf16.msra.mxu0 %v1303
        %1630 = vmatprep.subr.bf16.mxu0 %v1310
        %1631 = vmatpush1.bf16.msra.mxu0 %v1309
        %1632 = vmatprep.subr.bf16.mxu0 %v1316
        %1633 = vmatpush1.bf16.msra.mxu0 %v1315
        %1634 = vmatprep.subr.bf16.mxu0 %v1322
        %1635 = vmatpush1.bf16.msra.mxu0 %v1321
        %1636 = vmatprep.subr.bf16.mxu0 %v1328
        %1637 = vmatpush1.bf16.msra.mxu0 %v1327
        %1638 = vmatprep.mubr.bf16.mxu0 %v1605
        %1639 = vmatmul.mubr.bf16.gmra.mrb[0].mxu0 %v1604
        %v1640 = vpop.f32.mrb[0].mxu0
        %v1641 = vadd.f32 %v922, %v1640
        %v1642 = vpop.f32.mrb[0].mxu0
        %v1643 = vadd.f32 %v926, %v1642
        %v1644 = vpop.f32.mrb[0].mxu0
        %v1645 = vpop.f32.mrb[0].mxu0
        %1646 = vdwg.mxu0
        %1647 = vmatprep.subr.bf16.mxu0 %v1240
        %1648 = vmatpush1.bf16.msra.mxu0 %v1239
        %1649 = vmatprep.subr.bf16.mxu0 %v1246
        %1650 = vmatpush1.bf16.msra.mxu0 %v1245
        %1651 = vmatprep.subr.bf16.mxu0 %v1252
        %1652 = vmatpush1.bf16.msra.mxu0 %v1251
        %1653 = vmatprep.subr.bf16.mxu0 %v1258
        %1654 = vmatpush1.bf16.msra.mxu0 %v1257
        %1655 = vmatprep.subr.bf16.mxu0 %v1264
        %1656 = vmatpush1.bf16.msra.mxu0 %v1263
        %1657 = vmatprep.subr.bf16.mxu0 %v1270
        %1658 = vmatpush1.bf16.msra.mxu0 %v1269
        %1659 = vmatprep.subr.bf16.mxu0 %v1276
        %1660 = vmatpush1.bf16.msra.mxu0 %v1275
        %1661 = vmatprep.subr.bf16.mxu0 %v1282
        %1662 = vmatpush1.bf16.msra.mxu0 %v1281
        %1663 = vmatprep.subr.bf16.mxu0 %v1288
        %1664 = vmatpush1.bf16.msra.mxu0 %v1287
        %1665 = vmatprep.subr.bf16.mxu0 %v1294
        %1666 = vmatpush1.bf16.msra.mxu0 %v1293
        %1667 = vmatprep.subr.bf16.mxu0 %v1300
        %1668 = vmatpush1.bf16.msra.mxu0 %v1299
        %1669 = vmatprep.subr.bf16.mxu0 %v1306
        %1670 = vmatpush1.bf16.msra.mxu0 %v1305
        %1671 = vmatprep.subr.bf16.mxu0 %v1312
        %1672 = vmatpush1.bf16.msra.mxu0 %v1311
        %1673 = vmatprep.subr.bf16.mxu0 %v1318
        %1674 = vmatpush1.bf16.msra.mxu0 %v1317
        %1675 = vmatprep.subr.bf16.mxu0 %v1324
        %1676 = vmatpush1.bf16.msra.mxu0 %v1323
        %1677 = vmatprep.subr.bf16.mxu0 %v1330
        %1678 = vmatpush1.bf16.msra.mxu0 %v1329
        %1679 = vmatprep.mubr.bf16.mxu0 %v1605
        %1680 = vmatmul.mubr.bf16.gmra.mrb[0].mxu0 %v1604
        %v1681 = vpop.f32.mrb[0].mxu0
        %v1682 = vadd.f32 %v930, %v1681
        %v1683 = vpop.f32.mrb[0].mxu0
        %v1684 = vadd.f32 %v934, %v1683
        %v1685 = vpop.f32.mrb[0].mxu0
        %v1686 = vpop.f32.mrb[0].mxu0
        %1687 = vdwg.mxu0
        %1688 = vmatprep.subr.bf16.mxu0 %v1242
        %1689 = vmatpush1.bf16.msra.mxu0 %v1241
        %1690 = vmatprep.subr.bf16.mxu0 %v1248
        %1691 = vmatpush1.bf16.msra.mxu0 %v1247
        %1692 = vmatprep.subr.bf16.mxu0 %v1254
        %1693 = vmatpush1.bf16.msra.mxu0 %v1253
        %1694 = vmatprep.subr.bf16.mxu0 %v1260
        %1695 = vmatpush1.bf16.msra.mxu0 %v1259
        %1696 = vmatprep.subr.bf16.mxu0 %v1266
        %1697 = vmatpush1.bf16.msra.mxu0 %v1265
        %1698 = vmatprep.subr.bf16.mxu0 %v1272
        %1699 = vmatpush1.bf16.msra.mxu0 %v1271
        %1700 = vmatprep.subr.bf16.mxu0 %v1278
        %1701 = vmatpush1.bf16.msra.mxu0 %v1277
        %1702 = vmatprep.subr.bf16.mxu0 %v1284
        %1703 = vmatpush1.bf16.msra.mxu0 %v1283
        %1704 = vmatprep.subr.bf16.mxu0 %v1290
        %1705 = vmatpush1.bf16.msra.mxu0 %v1289
        %1706 = vmatprep.subr.bf16.mxu0 %v1296
        %1707 = vmatpush1.bf16.msra.mxu0 %v1295
        %1708 = vmatprep.subr.bf16.mxu0 %v1302
        %1709 = vmatpush1.bf16.msra.mxu0 %v1301
        %1710 = vmatprep.subr.bf16.mxu0 %v1308
        %1711 = vmatpush1.bf16.msra.mxu0 %v1307
        %1712 = vmatprep.subr.bf16.mxu0 %v1314
        %1713 = vmatpush1.bf16.msra.mxu0 %v1313
        %1714 = vmatprep.subr.bf16.mxu0 %v1320
        %1715 = vmatpush1.bf16.msra.mxu0 %v1319
        %1716 = vmatprep.subr.bf16.mxu0 %v1326
        %1717 = vmatpush1.bf16.msra.mxu0 %v1325
        %1718 = vmatprep.subr.bf16.mxu0 %v1332
        %1719 = vmatpush1.bf16.msra.mxu0 %v1331
        %1720 = vmatprep.mubr.bf16.mxu0 %v1605
        %1721 = vmatmul.mubr.bf16.gmra.mrb[0].mxu0 %v1604
        %v1722 = vpop.f32.mrb[0].mxu0
        %v1723 = vadd.f32 %v938, %v1722
        %v1724 = vpop.f32.mrb[0].mxu0
        %v1725 = vadd.f32 %v942, %v1724
        %v1726 = vpop.f32.mrb[0].mxu0
        %v1727 = vpop.f32.mrb[0].mxu0
        %1728 = vdwg.mxu0
        %v1729 = vadd.f32 %v1598, %v1641
        %v1730 = vadd.f32 %v1599, %v1643
        %v1731 = vadd.f32 %v1600, %v1682
        %v1732 = vadd.f32 %v1601, %v1684
        %v1733 = vmul.f32 %v1729, 0.5
        %v1734 = vmul.f32 %v1730, 0.5
        %v1735 = vtanh.pop %v1733
        %v1736 = vtanh.pop %v1734
        %v1737 = vadd.f32 %v1735, 1.0
        %v1738 = vadd.f32 %v1736, 1.0
        %v1739 = vmul.f32 %v1737, 0.5
        %v1740 = vmul.f32 %v1738, 0.5
        %v1741 = vmul.f32 %v1731, 0.5
        %v1742 = vmul.f32 %v1732, 0.5
        %v1743 = vtanh.pop %v1741
        %v1744 = vtanh.pop %v1742
        %v1745 = vadd.f32 %v1743, 1.0
        %v1746 = vadd.f32 %v1744, 1.0
        %v1747 = vmul.f32 %v1745, 0.5
        %v1748 = vmul.f32 %v1746, 0.5
        %v1749 = vmul.f32 %v1739, %v1723
        %v1750 = vmul.f32 %v1740, %v1725
        %v1751 = vadd.f32 %v1602, %v1749
        %v1752 = vadd.f32 %v1603, %v1750
        %v1753 = vtanh.pop %v1751
        %v1754 = vtanh.pop %v1752
        %v1755 = vsub.f32 1.0, %v1747
        %v1756 = vsub.f32 1.0, %v1748
        %v1757 = vmul.f32 %v1755, %v1753
        %v1758 = vmul.f32 %v1756, %v1754
        %v1759 = vmul.f32 %v1747, %v1593
        %v1760 = vmul.f32 %v1748, %v1594
        %v1761 = vadd.f32 %v1757, %v1759
        %v1762 = vadd.f32 %v1758, %v1760
        %s1763 = sadd.s32 %s904, 1
        %v1764 = vstv %s1763
        %vm1765 = vcmp.le.s32.totalorder %v1764, %v903
        %v1766 = vsel %vm1765, 1, 0
        %1767 = vset.pattern.permute.xlu0 0
        %1768 = vperm.xlu0 %1767, %v1766
        %v1769 = vpop.permute.xlu0 %1768
        %vm1770 = vcmp.eq.s32.totalorder %v1769, 1
        %v1771 = vsel %vm1770, %v1761, %v1593
        %v1772 = vsel %vm1770, %v1762, %v1594
        %v1773 = vld [vmem:[%s774] sm:$0xff]
        %v1774 = vld [vmem:[%s774 + $0x8] sm:$0xff]
        %v1775 = vld [vmem:[%s774 + $0x10] sm:$0xff]
        %v1776 = vunpack.c.l.bf16 %v1773
        %v1777 = vunpack.c.h.bf16 %v1773
        %v1778 = vunpack.c.l.bf16 %v1774
        %v1779 = vunpack.c.h.bf16 %v1774
        %v1780 = vunpack.c.l.bf16 %v1775
        %v1781 = vunpack.c.h.bf16 %v1775
        %v1782 = vpack.c.bf16 %v1771, %v1771
        %v1783 = vpack.c.bf16 %v1772, %v1772
        %1784 = vmatprep.subr.bf16.mxu0 %v1238
        %1785 = vmatpush1.bf16.msra.mxu0 %v1237
        %1786 = vmatprep.subr.bf16.mxu0 %v1244
        %1787 = vmatpush1.bf16.msra.mxu0 %v1243
        %1788 = vmatprep.subr.bf16.mxu0 %v1250
        %1789 = vmatpush1.bf16.msra.mxu0 %v1249
        %1790 = vmatprep.subr.bf16.mxu0 %v1256
        %1791 = vmatpush1.bf16.msra.mxu0 %v1255
        %1792 = vmatprep.subr.bf16.mxu0 %v1262
        %1793 = vmatpush1.bf16.msra.mxu0 %v1261
        %1794 = vmatprep.subr.bf16.mxu0 %v1268
        %1795 = vmatpush1.bf16.msra.mxu0 %v1267
        %1796 = vmatprep.subr.bf16.mxu0 %v1274
        %1797 = vmatpush1.bf16.msra.mxu0 %v1273
        %1798 = vmatprep.subr.bf16.mxu0 %v1280
        %1799 = vmatpush1.bf16.msra.mxu0 %v1279
        %1800 = vmatprep.subr.bf16.mxu0 %v1286
        %1801 = vmatpush1.bf16.msra.mxu0 %v1285
        %1802 = vmatprep.subr.bf16.mxu0 %v1292
        %1803 = vmatpush1.bf16.msra.mxu0 %v1291
        %1804 = vmatprep.subr.bf16.mxu0 %v1298
        %1805 = vmatpush1.bf16.msra.mxu0 %v1297
        %1806 = vmatprep.subr.bf16.mxu0 %v1304
        %1807 = vmatpush1.bf16.msra.mxu0 %v1303
        %1808 = vmatprep.subr.bf16.mxu0 %v1310
        %1809 = vmatpush1.bf16.msra.mxu0 %v1309
        %1810 = vmatprep.subr.bf16.mxu0 %v1316
        %1811 = vmatpush1.bf16.msra.mxu0 %v1315
        %1812 = vmatprep.subr.bf16.mxu0 %v1322
        %1813 = vmatpush1.bf16.msra.mxu0 %v1321
        %1814 = vmatprep.subr.bf16.mxu0 %v1328
        %1815 = vmatpush1.bf16.msra.mxu0 %v1327
        %1816 = vmatprep.mubr.bf16.mxu0 %v1783
        %1817 = vmatmul.mubr.bf16.gmra.mrb[0].mxu0 %v1782
        %v1818 = vpop.f32.mrb[0].mxu0
        %v1819 = vadd.f32 %v922, %v1818
        %v1820 = vpop.f32.mrb[0].mxu0
        %v1821 = vadd.f32 %v926, %v1820
        %v1822 = vpop.f32.mrb[0].mxu0
        %v1823 = vpop.f32.mrb[0].mxu0
        %1824 = vdwg.mxu0
        %1825 = vmatprep.subr.bf16.mxu0 %v1240
        %1826 = vmatpush1.bf16.msra.mxu0 %v1239
        %1827 = vmatprep.subr.bf16.mxu0 %v1246
        %1828 = vmatpush1.bf16.msra.mxu0 %v1245
        %1829 = vmatprep.subr.bf16.mxu0 %v1252
        %1830 = vmatpush1.bf16.msra.mxu0 %v1251
        %1831 = vmatprep.subr.bf16.mxu0 %v1258
        %1832 = vmatpush1.bf16.msra.mxu0 %v1257
        %1833 = vmatprep.subr.bf16.mxu0 %v1264
        %1834 = vmatpush1.bf16.msra.mxu0 %v1263
        %1835 = vmatprep.subr.bf16.mxu0 %v1270
        %1836 = vmatpush1.bf16.msra.mxu0 %v1269
        %1837 = vmatprep.subr.bf16.mxu0 %v1276
        %1838 = vmatpush1.bf16.msra.mxu0 %v1275
        %1839 = vmatprep.subr.bf16.mxu0 %v1282
        %1840 = vmatpush1.bf16.msra.mxu0 %v1281
        %1841 = vmatprep.subr.bf16.mxu0 %v1288
        %1842 = vmatpush1.bf16.msra.mxu0 %v1287
        %1843 = vmatprep.subr.bf16.mxu0 %v1294
        %1844 = vmatpush1.bf16.msra.mxu0 %v1293
        %1845 = vmatprep.subr.bf16.mxu0 %v1300
        %1846 = vmatpush1.bf16.msra.mxu0 %v1299
        %1847 = vmatprep.subr.bf16.mxu0 %v1306
        %1848 = vmatpush1.bf16.msra.mxu0 %v1305
        %1849 = vmatprep.subr.bf16.mxu0 %v1312
        %1850 = vmatpush1.bf16.msra.mxu0 %v1311
        %1851 = vmatprep.subr.bf16.mxu0 %v1318
        %1852 = vmatpush1.bf16.msra.mxu0 %v1317
        %1853 = vmatprep.subr.bf16.mxu0 %v1324
        %1854 = vmatpush1.bf16.msra.mxu0 %v1323
        %1855 = vmatprep.subr.bf16.mxu0 %v1330
        %1856 = vmatpush1.bf16.msra.mxu0 %v1329
        %1857 = vmatprep.mubr.bf16.mxu0 %v1783
        %1858 = vmatmul.mubr.bf16.gmra.mrb[0].mxu0 %v1782
        %v1859 = vpop.f32.mrb[0].mxu0
        %v1860 = vadd.f32 %v930, %v1859
        %v1861 = vpop.f32.mrb[0].mxu0
        %v1862 = vadd.f32 %v934, %v1861
        %v1863 = vpop.f32.mrb[0].mxu0
        %v1864 = vpop.f32.mrb[0].mxu0
        %1865 = vdwg.mxu0
        %1866 = vmatprep.subr.bf16.mxu0 %v1242
        %1867 = vmatpush1.bf16.msra.mxu0 %v1241
        %1868 = vmatprep.subr.bf16.mxu0 %v1248
        %1869 = vmatpush1.bf16.msra.mxu0 %v1247
        %1870 = vmatprep.subr.bf16.mxu0 %v1254
        %1871 = vmatpush1.bf16.msra.mxu0 %v1253
        %1872 = vmatprep.subr.bf16.mxu0 %v1260
        %1873 = vmatpush1.bf16.msra.mxu0 %v1259
        %1874 = vmatprep.subr.bf16.mxu0 %v1266
        %1875 = vmatpush1.bf16.msra.mxu0 %v1265
        %1876 = vmatprep.subr.bf16.mxu0 %v1272
        %1877 = vmatpush1.bf16.msra.mxu0 %v1271
        %1878 = vmatprep.subr.bf16.mxu0 %v1278
        %1879 = vmatpush1.bf16.msra.mxu0 %v1277
        %1880 = vmatprep.subr.bf16.mxu0 %v1284
        %1881 = vmatpush1.bf16.msra.mxu0 %v1283
        %1882 = vmatprep.subr.bf16.mxu0 %v1290
        %1883 = vmatpush1.bf16.msra.mxu0 %v1289
        %1884 = vmatprep.subr.bf16.mxu0 %v1296
        %1885 = vmatpush1.bf16.msra.mxu0 %v1295
        %1886 = vmatprep.subr.bf16.mxu0 %v1302
        %1887 = vmatpush1.bf16.msra.mxu0 %v1301
        %1888 = vmatprep.subr.bf16.mxu0 %v1308
        %1889 = vmatpush1.bf16.msra.mxu0 %v1307
        %1890 = vmatprep.subr.bf16.mxu0 %v1314
        %1891 = vmatpush1.bf16.msra.mxu0 %v1313
        %1892 = vmatprep.subr.bf16.mxu0 %v1320
        %1893 = vmatpush1.bf16.msra.mxu0 %v1319
        %1894 = vmatprep.subr.bf16.mxu0 %v1326
        %1895 = vmatpush1.bf16.msra.mxu0 %v1325
        %1896 = vmatprep.subr.bf16.mxu0 %v1332
        %1897 = vmatpush1.bf16.msra.mxu0 %v1331
        %1898 = vmatprep.mubr.bf16.mxu0 %v1783
        %1899 = vmatmul.mubr.bf16.gmra.mrb[0].mxu0 %v1782
        %v1900 = vpop.f32.mrb[0].mxu0
        %v1901 = vadd.f32 %v938, %v1900
        %v1902 = vpop.f32.mrb[0].mxu0
        %v1903 = vadd.f32 %v942, %v1902
        %v1904 = vpop.f32.mrb[0].mxu0
        %v1905 = vpop.f32.mrb[0].mxu0
        %1906 = vdwg.mxu0
        %v1907 = vadd.f32 %v1776, %v1819
        %v1908 = vadd.f32 %v1777, %v1821
        %v1909 = vadd.f32 %v1778, %v1860
        %v1910 = vadd.f32 %v1779, %v1862
        %v1911 = vmul.f32 %v1907, 0.5
        %v1912 = vmul.f32 %v1908, 0.5
        %v1913 = vtanh.pop %v1911
        %v1914 = vtanh.pop %v1912
        %v1915 = vadd.f32 %v1913, 1.0
        %v1916 = vadd.f32 %v1914, 1.0
        %v1917 = vmul.f32 %v1915, 0.5
        %v1918 = vmul.f32 %v1916, 0.5
        %v1919 = vmul.f32 %v1909, 0.5
        %v1920 = vmul.f32 %v1910, 0.5
        %v1921 = vtanh.pop %v1919
        %v1922 = vtanh.pop %v1920
        %v1923 = vadd.f32 %v1921, 1.0
        %v1924 = vadd.f32 %v1922, 1.0
        %v1925 = vmul.f32 %v1923, 0.5
        %v1926 = vmul.f32 %v1924, 0.5
        %v1927 = vmul.f32 %v1917, %v1901
        %v1928 = vmul.f32 %v1918, %v1903
        %v1929 = vadd.f32 %v1780, %v1927
        %v1930 = vadd.f32 %v1781, %v1928
        %v1931 = vtanh.pop %v1929
        %v1932 = vtanh.pop %v1930
        %v1933 = vsub.f32 1.0, %v1925
        %v1934 = vsub.f32 1.0, %v1926
        %v1935 = vmul.f32 %v1933, %v1931
        %v1936 = vmul.f32 %v1934, %v1932
        %v1937 = vmul.f32 %v1925, %v1771
        %v1938 = vmul.f32 %v1926, %v1772
        %v1939 = vadd.f32 %v1935, %v1937
        %v1940 = vadd.f32 %v1936, %v1938
        %s1941 = sadd.s32 %s904, 2
        %v1942 = vstv %s1941
        %vm1943 = vcmp.le.s32.totalorder %v1942, %v903
        %v1944 = vsel %vm1943, 1, 0
        %1945 = vset.pattern.permute.xlu0 0
        %1946 = vperm.xlu0 %1945, %v1944
        %v1947 = vpop.permute.xlu0 %1946
        %vm1948 = vcmp.eq.s32.totalorder %v1947, 1
        %v1949 = vsel %vm1948, %v1939, %v1771
        %v1950 = vsel %vm1948, %v1940, %v1772
        %v1951 = vld [vmem:[%s802] sm:$0xff]
        %v1952 = vld [vmem:[%s802 + $0x8] sm:$0xff]
        %v1953 = vld [vmem:[%s802 + $0x10] sm:$0xff]
        %v1954 = vunpack.c.l.bf16 %v1951
        %v1955 = vunpack.c.h.bf16 %v1951
        %v1956 = vunpack.c.l.bf16 %v1952
        %v1957 = vunpack.c.h.bf16 %v1952
        %v1958 = vunpack.c.l.bf16 %v1953
        %v1959 = vunpack.c.h.bf16 %v1953
        %v1960 = vpack.c.bf16 %v1949, %v1949
        %v1961 = vpack.c.bf16 %v1950, %v1950
        %1962 = vmatprep.subr.bf16.mxu0 %v1238
        %1963 = vmatpush1.bf16.msra.mxu0 %v1237
        %1964 = vmatprep.subr.bf16.mxu0 %v1244
        %1965 = vmatpush1.bf16.msra.mxu0 %v1243
        %1966 = vmatprep.subr.bf16.mxu0 %v1250
        %1967 = vmatpush1.bf16.msra.mxu0 %v1249
        %1968 = vmatprep.subr.bf16.mxu0 %v1256
        %1969 = vmatpush1.bf16.msra.mxu0 %v1255
        %1970 = vmatprep.subr.bf16.mxu0 %v1262
        %1971 = vmatpush1.bf16.msra.mxu0 %v1261
        %1972 = vmatprep.subr.bf16.mxu0 %v1268
        %1973 = vmatpush1.bf16.msra.mxu0 %v1267
        %1974 = vmatprep.subr.bf16.mxu0 %v1274
        %1975 = vmatpush1.bf16.msra.mxu0 %v1273
        %1976 = vmatprep.subr.bf16.mxu0 %v1280
        %1977 = vmatpush1.bf16.msra.mxu0 %v1279
        %1978 = vmatprep.subr.bf16.mxu0 %v1286
        %1979 = vmatpush1.bf16.msra.mxu0 %v1285
        %1980 = vmatprep.subr.bf16.mxu0 %v1292
        %1981 = vmatpush1.bf16.msra.mxu0 %v1291
        %1982 = vmatprep.subr.bf16.mxu0 %v1298
        %1983 = vmatpush1.bf16.msra.mxu0 %v1297
        %1984 = vmatprep.subr.bf16.mxu0 %v1304
        %1985 = vmatpush1.bf16.msra.mxu0 %v1303
        %1986 = vmatprep.subr.bf16.mxu0 %v1310
        %1987 = vmatpush1.bf16.msra.mxu0 %v1309
        %1988 = vmatprep.subr.bf16.mxu0 %v1316
        %1989 = vmatpush1.bf16.msra.mxu0 %v1315
        %1990 = vmatprep.subr.bf16.mxu0 %v1322
        %1991 = vmatpush1.bf16.msra.mxu0 %v1321
        %1992 = vmatprep.subr.bf16.mxu0 %v1328
        %1993 = vmatpush1.bf16.msra.mxu0 %v1327
        %1994 = vmatprep.mubr.bf16.mxu0 %v1961
        %1995 = vmatmul.mubr.bf16.gmra.mrb[0].mxu0 %v1960
        %v1996 = vpop.f32.mrb[0].mxu0
        %v1997 = vadd.f32 %v922, %v1996
        %v1998 = vpop.f32.mrb[0].mxu0
        %v1999 = vadd.f32 %v926, %v1998
        %v2000 = vpop.f32.mrb[0].mxu0
        %v2001 = vpop.f32.mrb[0].mxu0
        %2002 = vdwg.mxu0
        %2003 = vmatprep.subr.bf16.mxu0 %v1240
        %2004 = vmatpush1.bf16.msra.mxu0 %v1239
        %2005 = vmatprep.subr.bf16.mxu0 %v1246
        %2006 = vmatpush1.bf16.msra.mxu0 %v1245
        %2007 = vmatprep.subr.bf16.mxu0 %v1252
        %2008 = vmatpush1.bf16.msra.mxu0 %v1251
        %2009 = vmatprep.subr.bf16.mxu0 %v1258
        %2010 = vmatpush1.bf16.msra.mxu0 %v1257
        %2011 = vmatprep.subr.bf16.mxu0 %v1264
        %2012 = vmatpush1.bf16.msra.mxu0 %v1263
        %2013 = vmatprep.subr.bf16.mxu0 %v1270
        %2014 = vmatpush1.bf16.msra.mxu0 %v1269
        %2015 = vmatprep.subr.bf16.mxu0 %v1276
        %2016 = vmatpush1.bf16.msra.mxu0 %v1275
        %2017 = vmatprep.subr.bf16.mxu0 %v1282
        %2018 = vmatpush1.bf16.msra.mxu0 %v1281
        %2019 = vmatprep.subr.bf16.mxu0 %v1288
        %2020 = vmatpush1.bf16.msra.mxu0 %v1287
        %2021 = vmatprep.subr.bf16.mxu0 %v1294
        %2022 = vmatpush1.bf16.msra.mxu0 %v1293
        %2023 = vmatprep.subr.bf16.mxu0 %v1300
        %2024 = vmatpush1.bf16.msra.mxu0 %v1299
        %2025 = vmatprep.subr.bf16.mxu0 %v1306
        %2026 = vmatpush1.bf16.msra.mxu0 %v1305
        %2027 = vmatprep.subr.bf16.mxu0 %v1312
        %2028 = vmatpush1.bf16.msra.mxu0 %v1311
        %2029 = vmatprep.subr.bf16.mxu0 %v1318
        %2030 = vmatpush1.bf16.msra.mxu0 %v1317
        %2031 = vmatprep.subr.bf16.mxu0 %v1324
        %2032 = vmatpush1.bf16.msra.mxu0 %v1323
        %2033 = vmatprep.subr.bf16.mxu0 %v1330
        %2034 = vmatpush1.bf16.msra.mxu0 %v1329
        %2035 = vmatprep.mubr.bf16.mxu0 %v1961
        %2036 = vmatmul.mubr.bf16.gmra.mrb[0].mxu0 %v1960
        %v2037 = vpop.f32.mrb[0].mxu0
        %v2038 = vadd.f32 %v930, %v2037
        %v2039 = vpop.f32.mrb[0].mxu0
        %v2040 = vadd.f32 %v934, %v2039
        %v2041 = vpop.f32.mrb[0].mxu0
        %v2042 = vpop.f32.mrb[0].mxu0
        %2043 = vdwg.mxu0
        %2044 = vmatprep.subr.bf16.mxu0 %v1242
        %2045 = vmatpush1.bf16.msra.mxu0 %v1241
        %2046 = vmatprep.subr.bf16.mxu0 %v1248
        %2047 = vmatpush1.bf16.msra.mxu0 %v1247
        %2048 = vmatprep.subr.bf16.mxu0 %v1254
        %2049 = vmatpush1.bf16.msra.mxu0 %v1253
        %2050 = vmatprep.subr.bf16.mxu0 %v1260
        %2051 = vmatpush1.bf16.msra.mxu0 %v1259
        %2052 = vmatprep.subr.bf16.mxu0 %v1266
        %2053 = vmatpush1.bf16.msra.mxu0 %v1265
        %2054 = vmatprep.subr.bf16.mxu0 %v1272
        %2055 = vmatpush1.bf16.msra.mxu0 %v1271
        %2056 = vmatprep.subr.bf16.mxu0 %v1278
        %2057 = vmatpush1.bf16.msra.mxu0 %v1277
        %2058 = vmatprep.subr.bf16.mxu0 %v1284
        %2059 = vmatpush1.bf16.msra.mxu0 %v1283
        %2060 = vmatprep.subr.bf16.mxu0 %v1290
        %2061 = vmatpush1.bf16.msra.mxu0 %v1289
        %2062 = vmatprep.subr.bf16.mxu0 %v1296
        %2063 = vmatpush1.bf16.msra.mxu0 %v1295
        %2064 = vmatprep.subr.bf16.mxu0 %v1302
        %2065 = vmatpush1.bf16.msra.mxu0 %v1301
        %2066 = vmatprep.subr.bf16.mxu0 %v1308
        %2067 = vmatpush1.bf16.msra.mxu0 %v1307
        %2068 = vmatprep.subr.bf16.mxu0 %v1314
        %2069 = vmatpush1.bf16.msra.mxu0 %v1313
        %2070 = vmatprep.subr.bf16.mxu0 %v1320
        %2071 = vmatpush1.bf16.msra.mxu0 %v1319
        %2072 = vmatprep.subr.bf16.mxu0 %v1326
        %2073 = vmatpush1.bf16.msra.mxu0 %v1325
        %2074 = vmatprep.subr.bf16.mxu0 %v1332
        %2075 = vmatpush1.bf16.msra.mxu0 %v1331
        %2076 = vmatprep.mubr.bf16.mxu0 %v1961
        %2077 = vmatmul.mubr.bf16.gmra.mrb[0].mxu0 %v1960
        %v2078 = vpop.f32.mrb[0].mxu0
        %v2079 = vadd.f32 %v938, %v2078
        %v2080 = vpop.f32.mrb[0].mxu0
        %v2081 = vadd.f32 %v942, %v2080
        %v2082 = vpop.f32.mrb[0].mxu0
        %v2083 = vpop.f32.mrb[0].mxu0
        %2084 = vdwg.mxu0
        %v2085 = vadd.f32 %v1954, %v1997
        %v2086 = vadd.f32 %v1955, %v1999
        %v2087 = vadd.f32 %v1956, %v2038
        %v2088 = vadd.f32 %v1957, %v2040
        %v2089 = vmul.f32 %v2085, 0.5
        %v2090 = vmul.f32 %v2086, 0.5
        %v2091 = vtanh.pop %v2089
        %v2092 = vtanh.pop %v2090
        %v2093 = vadd.f32 %v2091, 1.0
        %v2094 = vadd.f32 %v2092, 1.0
        %v2095 = vmul.f32 %v2093, 0.5
        %v2096 = vmul.f32 %v2094, 0.5
        %v2097 = vmul.f32 %v2087, 0.5
        %v2098 = vmul.f32 %v2088, 0.5
        %v2099 = vtanh.pop %v2097
        %v2100 = vtanh.pop %v2098
        %v2101 = vadd.f32 %v2099, 1.0
        %v2102 = vadd.f32 %v2100, 1.0
        %v2103 = vmul.f32 %v2101, 0.5
        %v2104 = vmul.f32 %v2102, 0.5
        %v2105 = vmul.f32 %v2095, %v2079
        %v2106 = vmul.f32 %v2096, %v2081
        %v2107 = vadd.f32 %v1958, %v2105
        %v2108 = vadd.f32 %v1959, %v2106
        %v2109 = vtanh.pop %v2107
        %v2110 = vtanh.pop %v2108
        %v2111 = vsub.f32 1.0, %v2103
        %v2112 = vsub.f32 1.0, %v2104
        %v2113 = vmul.f32 %v2111, %v2109
        %v2114 = vmul.f32 %v2112, %v2110
        %v2115 = vmul.f32 %v2103, %v1949
        %v2116 = vmul.f32 %v2104, %v1950
        %v2117 = vadd.f32 %v2113, %v2115
        %v2118 = vadd.f32 %v2114, %v2116
        %s2119 = sadd.s32 %s904, 3
        %v2120 = vstv %s2119
        %vm2121 = vcmp.le.s32.totalorder %v2120, %v903
        %v2122 = vsel %vm2121, 1, 0
        %2123 = vset.pattern.permute.xlu0 0
        %2124 = vperm.xlu0 %2123, %v2122
        %v2125 = vpop.permute.xlu0 %2124
        %vm2126 = vcmp.eq.s32.totalorder %v2125, 1
        %v2127 = vsel %vm2126, %v2117, %v1949
        %v2128 = vsel %vm2126, %v2118, %v1950
        %2129 = vst [vmem:[#allocation3] sm:$0xff] %v2127
        %2130 = vst [vmem:[#allocation3 + $0x8] sm:$0xff] %v2128
        %p2131 = scmp.eq.s32.totalorder %s26, 1
        // Predicated region
        $region93: #{discriminator_forward.1} parent=63 // pred_check
          %p2132 = pneg %p2131
        $region94: #{discriminator_forward.1} parent=63 // pred_check_branch
          %2134 = sbr.rel (%p2132) target = $region96
        $region95: #{discriminator_forward.1} parent=63 // pred_region
          %v2135 = vpack.c.bf16 %v2127, %v2127
          %v2136 = vpack.c.bf16 %v2128, %v2128
          %v2137 = vld [vmem:[#allocation8] sm:$0xff]
          %v2138 = vld [vmem:[#allocation8 + $0x8] sm:$0xff]
          %v2139 = vld [vmem:[#allocation8 + $0x10] sm:$0xff]
          %v2140 = vld [vmem:[#allocation8 + $0x18] sm:$0xff]
          %v2141 = vld [vmem:[#allocation8 + $0x20] sm:$0xff]
          %v2142 = vld [vmem:[#allocation8 + $0x28] sm:$0xff]
          %v2143 = vld [vmem:[#allocation8 + $0x30] sm:$0xff]
          %v2144 = vld [vmem:[#allocation8 + $0x38] sm:$0xff]
          %v2145 = vld [vmem:[#allocation8 + $0x40] sm:$0xff]
          %v2146 = vld [vmem:[#allocation8 + $0x48] sm:$0xff]
          %v2147 = vld [vmem:[#allocation8 + $0x50] sm:$0xff]
          %v2148 = vld [vmem:[#allocation8 + $0x58] sm:$0xff]
          %v2149 = vld [vmem:[#allocation8 + $0x60] sm:$0xff]
          %v2150 = vld [vmem:[#allocation8 + $0x68] sm:$0xff]
          %v2151 = vld [vmem:[#allocation8 + $0x70] sm:$0xff]
          %v2152 = vld [vmem:[#allocation8 + $0x78] sm:$0xff]
          %v2153 = vld [vmem:[#allocation8 + $0x80] sm:$0xff]
          %v2154 = vld [vmem:[#allocation8 + $0x88] sm:$0xff]
          %v2155 = vld [vmem:[#allocation8 + $0x90] sm:$0xff]
          %v2156 = vld [vmem:[#allocation8 + $0x98] sm:$0xff]
          %v2157 = vld [vmem:[#allocation8 + $0xa0] sm:$0xff]
          %v2158 = vld [vmem:[#allocation8 + $0xa8] sm:$0xff]
          %v2159 = vld [vmem:[#allocation8 + $0xb0] sm:$0xff]
          %v2160 = vld [vmem:[#allocation8 + $0xb8] sm:$0xff]
          %v2161 = vld [vmem:[#allocation8 + $0xc0] sm:$0xff]
          %v2162 = vld [vmem:[#allocation8 + $0xc8] sm:$0xff]
          %v2163 = vld [vmem:[#allocation8 + $0xd0] sm:$0xff]
          %v2164 = vld [vmem:[#allocation8 + $0xd8] sm:$0xff]
          %v2165 = vld [vmem:[#allocation8 + $0xe0] sm:$0xff]
          %v2166 = vld [vmem:[#allocation8 + $0xe8] sm:$0xff]
          %v2167 = vld [vmem:[#allocation8 + $0xf0] sm:$0xff]
          %v2168 = vld [vmem:[#allocation8 + $0xf8] sm:$0xff]
          %v2169 = vld [vmem:[%s6] sm:$0x3]
          %v2171 = vlaneseq
          %v2172 = vshrl.u32 %v2171, 7
          %v2173 = vsub.s32 0, %v2172
          %v2174 = vrot.slane %v2169, %v2173
          %v2175 = vlaneseq
          %v2176 = vshrl.u32 %v2175, 7
          %v2177 = vsub.s32 1, %v2176
          %v2178 = vrot.slane %v2169, %v2177
          %v2213 = vunpack.c.l.b16 %v2137
          %v2214 = vunpack.c.h.b16 %v2137
          %v2215 = vunpack.c.l.b16 %v2138
          %v2216 = vunpack.c.h.b16 %v2138
          %v2217 = vunpack.c.l.b16 %v2139
          %v2218 = vunpack.c.h.b16 %v2139
          %v2219 = vunpack.c.l.b16 %v2140
          %v2220 = vunpack.c.h.b16 %v2140
          %v2221 = vunpack.c.l.b16 %v2141
          %v2222 = vunpack.c.h.b16 %v2141
          %v2223 = vunpack.c.l.b16 %v2142
          %v2224 = vunpack.c.h.b16 %v2142
          %v2225 = vunpack.c.l.b16 %v2143
          %v2226 = vunpack.c.h.b16 %v2143
          %v2227 = vunpack.c.l.b16 %v2144
          %v2228 = vunpack.c.h.b16 %v2144
          %v2229 = vunpack.c.l.b16 %v2145
          %v2230 = vunpack.c.h.b16 %v2145
          %v2231 = vunpack.c.l.b16 %v2146
          %v2232 = vunpack.c.h.b16 %v2146
          %v2233 = vunpack.c.l.b16 %v2147
          %v2234 = vunpack.c.h.b16 %v2147
          %v2235 = vunpack.c.l.b16 %v2148
          %v2236 = vunpack.c.h.b16 %v2148
          %v2237 = vunpack.c.l.b16 %v2149
          %v2238 = vunpack.c.h.b16 %v2149
          %v2239 = vunpack.c.l.b16 %v2150
          %v2240 = vunpack.c.h.b16 %v2150
          %v2241 = vunpack.c.l.b16 %v2151
          %v2242 = vunpack.c.h.b16 %v2151
          %v2243 = vunpack.c.l.b16 %v2152
          %v2244 = vunpack.c.h.b16 %v2152
          %v2245 = vunpack.c.l.b16 %v2153
          %v2246 = vunpack.c.h.b16 %v2153
          %v2247 = vunpack.c.l.b16 %v2154
          %v2248 = vunpack.c.h.b16 %v2154
          %v2249 = vunpack.c.l.b16 %v2155
          %v2250 = vunpack.c.h.b16 %v2155
          %v2251 = vunpack.c.l.b16 %v2156
          %v2252 = vunpack.c.h.b16 %v2156
          %v2253 = vunpack.c.l.b16 %v2157
          %v2254 = vunpack.c.h.b16 %v2157
          %v2255 = vunpack.c.l.b16 %v2158
          %v2256 = vunpack.c.h.b16 %v2158
          %v2257 = vunpack.c.l.b16 %v2159
          %v2258 = vunpack.c.h.b16 %v2159
          %v2259 = vunpack.c.l.b16 %v2160
          %v2260 = vunpack.c.h.b16 %v2160
          %v2261 = vunpack.c.l.b16 %v2161
          %v2262 = vunpack.c.h.b16 %v2161
          %v2263 = vunpack.c.l.b16 %v2162
          %v2264 = vunpack.c.h.b16 %v2162
          %v2265 = vunpack.c.l.b16 %v2163
          %v2266 = vunpack.c.h.b16 %v2163
          %v2267 = vunpack.c.l.b16 %v2164
          %v2268 = vunpack.c.h.b16 %v2164
          %v2269 = vunpack.c.l.b16 %v2165
          %v2270 = vunpack.c.h.b16 %v2165
          %v2271 = vunpack.c.l.b16 %v2166
          %v2272 = vunpack.c.h.b16 %v2166
          %v2273 = vunpack.c.l.b16 %v2167
          %v2274 = vunpack.c.h.b16 %v2167
          %v2275 = vunpack.c.l.b16 %v2168
          %v2276 = vunpack.c.h.b16 %v2168
          %v2277 = vpack.c.b16 %v2215, %v2213
          %v2278 = vpack.c.b16 %v2216, %v2214
          %v2279 = vpack.c.b16 %v2219, %v2217
          %v2280 = vpack.c.b16 %v2220, %v2218
          %v2281 = vpack.c.b16 %v2223, %v2221
          %v2282 = vpack.c.b16 %v2224, %v2222
          %v2283 = vpack.c.b16 %v2227, %v2225
          %v2284 = vpack.c.b16 %v2228, %v2226
          %v2285 = vpack.c.b16 %v2231, %v2229
          %v2286 = vpack.c.b16 %v2232, %v2230
          %v2287 = vpack.c.b16 %v2235, %v2233
          %v2288 = vpack.c.b16 %v2236, %v2234
          %v2289 = vpack.c.b16 %v2239, %v2237
          %v2290 = vpack.c.b16 %v2240, %v2238
          %v2291 = vpack.c.b16 %v2243, %v2241
          %v2292 = vpack.c.b16 %v2244, %v2242
          %v2293 = vpack.c.b16 %v2247, %v2245
          %v2294 = vpack.c.b16 %v2248, %v2246
          %v2295 = vpack.c.b16 %v2251, %v2249
          %v2296 = vpack.c.b16 %v2252, %v2250
          %v2297 = vpack.c.b16 %v2255, %v2253
          %v2298 = vpack.c.b16 %v2256, %v2254
          %v2299 = vpack.c.b16 %v2259, %v2257
          %v2300 = vpack.c.b16 %v2260, %v2258
          %v2301 = vpack.c.b16 %v2263, %v2261
          %v2302 = vpack.c.b16 %v2264, %v2262
          %v2303 = vpack.c.b16 %v2267, %v2265
          %v2304 = vpack.c.b16 %v2268, %v2266
          %v2305 = vpack.c.b16 %v2271, %v2269
          %v2306 = vpack.c.b16 %v2272, %v2270
          %v2307 = vpack.c.b16 %v2275, %v2273
          %v2308 = vpack.c.b16 %v2276, %v2274
          %2341 = vmatprep.subr.bf16.mxu0 %v2278
          %2342 = vmatpush1.bf16.msra.mxu0 %v2277
          %2343 = vmatprep.subr.bf16.mxu0 %v2280
          %2344 = vmatpush1.bf16.msra.mxu0 %v2279
          %2345 = vmatprep.subr.bf16.mxu0 %v2282
          %2346 = vmatpush1.bf16.msra.mxu0 %v2281
          %2347 = vmatprep.subr.bf16.mxu0 %v2284
          %2348 = vmatpush1.bf16.msra.mxu0 %v2283
          %2349 = vmatprep.subr.bf16.mxu0 %v2286
          %2350 = vmatpush1.bf16.msra.mxu0 %v2285
          %2351 = vmatprep.subr.bf16.mxu0 %v2288
          %2352 = vmatpush1.bf16.msra.mxu0 %v2287
          %2353 = vmatprep.subr.bf16.mxu0 %v2290
          %2354 = vmatpush1.bf16.msra.mxu0 %v2289
          %2355 = vmatprep.subr.bf16.mxu0 %v2292
          %2356 = vmatpush1.bf16.msra.mxu0 %v2291
          %2357 = vmatprep.subr.bf16.mxu0 %v2294
          %2358 = vmatpush1.bf16.msra.mxu0 %v2293
          %2359 = vmatprep.subr.bf16.mxu0 %v2296
          %2360 = vmatpush1.bf16.msra.mxu0 %v2295
          %2361 = vmatprep.subr.bf16.mxu0 %v2298
          %2362 = vmatpush1.bf16.msra.mxu0 %v2297
          %2363 = vmatprep.subr.bf16.mxu0 %v2300
          %2364 = vmatpush1.bf16.msra.mxu0 %v2299
          %2365 = vmatprep.subr.bf16.mxu0 %v2302
          %2366 = vmatpush1.bf16.msra.mxu0 %v2301
          %2367 = vmatprep.subr.bf16.mxu0 %v2304
          %2368 = vmatpush1.bf16.msra.mxu0 %v2303
          %2369 = vmatprep.subr.bf16.mxu0 %v2306
          %2370 = vmatpush1.bf16.msra.mxu0 %v2305
          %2371 = vmatprep.subr.bf16.mxu0 %v2308
          %2372 = vmatpush1.bf16.msra.mxu0 %v2307
          %2373 = vmatprep.mubr.bf16.mxu0 %v2136
          %2374 = vmatmul.mubr.bf16.gmra.mrb[0].mxu0 %v2135
          %v2375 = vpop.f32.mrb[0].mxu0
          %v2376 = vadd.f32 %v2174, %v2375
          %v2377 = vpop.f32.mrb[0].mxu0
          %v2378 = vadd.f32 %v2178, %v2377
          %v2379 = vpop.f32.mrb[0].mxu0
          %v2380 = vpop.f32.mrb[0].mxu0
          %2381 = vdwg.mxu0
          %v2382 = vmax.f32 %v2376, 0.0
          %v2383 = vmax.f32 %v2378, 0.0
          %v2384 = vpack.c.bf16 %v2382, %v2382
          %v2385 = vpack.c.bf16 %v2383, %v2383
          %v2386 = vld [vmem:[#allocation9] sm:$0xf]
          %v2387 = vld [vmem:[#allocation9 + $0x4] sm:$0xf]
          %v2388 = vld [vmem:[#allocation9 + $0x8] sm:$0xf]
          %v2389 = vld [vmem:[#allocation9 + $0xc] sm:$0xf]
          %v2390 = vld [vmem:[#allocation9 + $0x10] sm:$0xf]
          %v2391 = vld [vmem:[#allocation9 + $0x14] sm:$0xf]
          %v2392 = vld [vmem:[#allocation9 + $0x18] sm:$0xf]
          %v2393 = vld [vmem:[#allocation9 + $0x1c] sm:$0xf]
          %v2394 = vld [vmem:[#allocation9 + $0x20] sm:$0xf]
          %v2395 = vld [vmem:[#allocation9 + $0x24] sm:$0xf]
          %v2396 = vld [vmem:[#allocation9 + $0x28] sm:$0xf]
          %v2397 = vld [vmem:[#allocation9 + $0x2c] sm:$0xf]
          %v2398 = vld [vmem:[#allocation9 + $0x30] sm:$0xf]
          %v2399 = vld [vmem:[#allocation9 + $0x34] sm:$0xf]
          %v2400 = vld [vmem:[#allocation9 + $0x38] sm:$0xf]
          %v2401 = vld [vmem:[#allocation9 + $0x3c] sm:$0xf]
          %v2402 = vld [vmem:[#allocation9 + $0x40] sm:$0xf]
          %v2403 = vld [vmem:[#allocation9 + $0x44] sm:$0xf]
          %v2404 = vld [vmem:[#allocation9 + $0x48] sm:$0xf]
          %v2405 = vld [vmem:[#allocation9 + $0x4c] sm:$0xf]
          %v2406 = vld [vmem:[#allocation9 + $0x50] sm:$0xf]
          %v2407 = vld [vmem:[#allocation9 + $0x54] sm:$0xf]
          %v2408 = vld [vmem:[#allocation9 + $0x58] sm:$0xf]
          %v2409 = vld [vmem:[#allocation9 + $0x5c] sm:$0xf]
          %v2410 = vld [vmem:[#allocation9 + $0x60] sm:$0xf]
          %v2411 = vld [vmem:[#allocation9 + $0x64] sm:$0xf]
          %v2412 = vld [vmem:[#allocation9 + $0x68] sm:$0xf]
          %v2413 = vld [vmem:[#allocation9 + $0x6c] sm:$0xf]
          %v2414 = vld [vmem:[#allocation9 + $0x70] sm:$0xf]
          %v2415 = vld [vmem:[#allocation9 + $0x74] sm:$0xf]
          %v2416 = vld [vmem:[#allocation9 + $0x78] sm:$0xf]
          %v2417 = vld [vmem:[#allocation9 + $0x7c] sm:$0xf]
          %v2418 = vld [vmem:[#allocation11] sm:$0x1]
          %v2420 = vlaneseq
          %v2421 = vshrl.u32 %v2420, 7
          %v2422 = vsub.s32 0, %v2421
          %v2423 = vrot.slane %v2418, %v2422
          %v2457 = vunpack.c.l.b16 %v2386
          %v2458 = vunpack.c.l.b16 %v2387
          %v2459 = vunpack.c.l.b16 %v2388
          %v2460 = vunpack.c.l.b16 %v2389
          %v2461 = vunpack.c.l.b16 %v2390
          %v2462 = vunpack.c.l.b16 %v2391
          %v2463 = vunpack.c.l.b16 %v2392
          %v2464 = vunpack.c.l.b16 %v2393
          %v2465 = vunpack.c.l.b16 %v2394
          %v2466 = vunpack.c.l.b16 %v2395
          %v2467 = vunpack.c.l.b16 %v2396
          %v2468 = vunpack.c.l.b16 %v2397
          %v2469 = vunpack.c.l.b16 %v2398
          %v2470 = vunpack.c.l.b16 %v2399
          %v2471 = vunpack.c.l.b16 %v2400
          %v2472 = vunpack.c.l.b16 %v2401
          %v2473 = vunpack.c.l.b16 %v2402
          %v2474 = vunpack.c.l.b16 %v2403
          %v2475 = vunpack.c.l.b16 %v2404
          %v2476 = vunpack.c.l.b16 %v2405
          %v2477 = vunpack.c.l.b16 %v2406
          %v2478 = vunpack.c.l.b16 %v2407
          %v2479 = vunpack.c.l.b16 %v2408
          %v2480 = vunpack.c.l.b16 %v2409
          %v2481 = vunpack.c.l.b16 %v2410
          %v2482 = vunpack.c.l.b16 %v2411
          %v2483 = vunpack.c.l.b16 %v2412
          %v2484 = vunpack.c.l.b16 %v2413
          %v2485 = vunpack.c.l.b16 %v2414
          %v2486 = vunpack.c.l.b16 %v2415
          %v2487 = vunpack.c.l.b16 %v2416
          %v2488 = vunpack.c.l.b16 %v2417
          %v2489 = vpack.c.b16 %v2458, %v2457
          %v2490 = vpack.c.b16 %v2460, %v2459
          %v2491 = vpack.c.b16 %v2462, %v2461
          %v2492 = vpack.c.b16 %v2464, %v2463
          %v2493 = vpack.c.b16 %v2466, %v2465
          %v2494 = vpack.c.b16 %v2468, %v2467
          %v2495 = vpack.c.b16 %v2470, %v2469
          %v2496 = vpack.c.b16 %v2472, %v2471
          %v2497 = vpack.c.b16 %v2474, %v2473
          %v2498 = vpack.c.b16 %v2476, %v2475
          %v2499 = vpack.c.b16 %v2478, %v2477
          %v2500 = vpack.c.b16 %v2480, %v2479
          %v2501 = vpack.c.b16 %v2482, %v2481
          %v2502 = vpack.c.b16 %v2484, %v2483
          %v2503 = vpack.c.b16 %v2486, %v2485
          %v2504 = vpack.c.b16 %v2488, %v2487
          %2521 = vmatprep.subr.bf16.mxu0 0
          %2522 = vmatpush1.bf16.msra.mxu0 %v2489
          %2523 = vmatprep.subr.bf16.mxu0 0
          %2524 = vmatpush1.bf16.msra.mxu0 %v2490
          %2525 = vmatprep.subr.bf16.mxu0 0
          %2526 = vmatpush1.bf16.msra.mxu0 %v2491
          %2527 = vmatprep.subr.bf16.mxu0 0
          %2528 = vmatpush1.bf16.msra.mxu0 %v2492
          %2529 = vmatprep.subr.bf16.mxu0 0
          %2530 = vmatpush1.bf16.msra.mxu0 %v2493
          %2531 = vmatprep.subr.bf16.mxu0 0
          %2532 = vmatpush1.bf16.msra.mxu0 %v2494
          %2533 = vmatprep.subr.bf16.mxu0 0
          %2534 = vmatpush1.bf16.msra.mxu0 %v2495
          %2535 = vmatprep.subr.bf16.mxu0 0
          %2536 = vmatpush1.bf16.msra.mxu0 %v2496
          %2537 = vmatprep.subr.bf16.mxu0 0
          %2538 = vmatpush1.bf16.msra.mxu0 %v2497
          %2539 = vmatprep.subr.bf16.mxu0 0
          %2540 = vmatpush1.bf16.msra.mxu0 %v2498
          %2541 = vmatprep.subr.bf16.mxu0 0
          %2542 = vmatpush1.bf16.msra.mxu0 %v2499
          %2543 = vmatprep.subr.bf16.mxu0 0
          %2544 = vmatpush1.bf16.msra.mxu0 %v2500
          %2545 = vmatprep.subr.bf16.mxu0 0
          %2546 = vmatpush1.bf16.msra.mxu0 %v2501
          %2547 = vmatprep.subr.bf16.mxu0 0
          %2548 = vmatpush1.bf16.msra.mxu0 %v2502
          %2549 = vmatprep.subr.bf16.mxu0 0
          %2550 = vmatpush1.bf16.msra.mxu0 %v2503
          %2551 = vmatprep.subr.bf16.mxu0 0
          %2552 = vmatpush1.bf16.msra.mxu0 %v2504
          %2553 = vmatprep.mubr.bf16.mxu0 %v2385
          %2554 = vmatmul.mubr.bf16.gmra.mrb[0].mxu0 %v2384
          %v2555 = vpop.f32.mrb[0].mxu0
          %v2556 = vadd.f32 %v2423, %v2555
          %v2557 = vpop.f32.mrb[0].mxu0
          %v2558 = vpop.f32.mrb[0].mxu0
          %v2559 = vpop.f32.mrb[0].mxu0
          %2560 = vdwg.mxu0
          %v2561 = vmax.f32 %v2556, 0.0
          %v2562 = vpack.c.bf16 %v2561, %v2561
          %v2563 = vld [vmem:[%s9] sm:$0xf]
          %v2564 = vld [vmem:[%s9 + $0x4] sm:$0xf]
          %v2565 = vld [vmem:[%s9 + $0x8] sm:$0xf]
          %v2566 = vld [vmem:[%s9 + $0xc] sm:$0xf]
          %v2567 = vld [vmem:[%s9 + $0x10] sm:$0xf]
          %v2568 = vld [vmem:[%s9 + $0x14] sm:$0xf]
          %v2569 = vld [vmem:[%s9 + $0x18] sm:$0xf]
          %v2570 = vld [vmem:[%s9 + $0x1c] sm:$0xf]
          %v2571 = vld [vmem:[%s9 + $0x20] sm:$0xf]
          %v2572 = vld [vmem:[%s9 + $0x24] sm:$0xf]
          %v2573 = vld [vmem:[%s9 + $0x28] sm:$0xf]
          %v2574 = vld [vmem:[%s9 + $0x2c] sm:$0xf]
          %v2575 = vld [vmem:[%s9 + $0x30] sm:$0xf]
          %v2576 = vld [vmem:[%s9 + $0x34] sm:$0xf]
          %v2577 = vld [vmem:[%s9 + $0x38] sm:$0xf]
          %v2578 = vld [vmem:[%s9 + $0x3c] sm:$0xf]
          %v2579 = vld [vmem:[#allocation12] sm:$0x1]
          %v2581 = vlaneseq
          %v2582 = vshrl.u32 %v2581, 7
          %v2583 = vsub.s32 0, %v2582
          %v2584 = vrot.slane %v2579, %v2583
          %v2602 = vunpack.c.l.b16 %v2563
          %v2603 = vunpack.c.l.b16 %v2564
          %v2604 = vunpack.c.l.b16 %v2565
          %v2605 = vunpack.c.l.b16 %v2566
          %v2606 = vunpack.c.l.b16 %v2567
          %v2607 = vunpack.c.l.b16 %v2568
          %v2608 = vunpack.c.l.b16 %v2569
          %v2609 = vunpack.c.l.b16 %v2570
          %v2610 = vunpack.c.l.b16 %v2571
          %v2611 = vunpack.c.l.b16 %v2572
          %v2612 = vunpack.c.l.b16 %v2573
          %v2613 = vunpack.c.l.b16 %v2574
          %v2614 = vunpack.c.l.b16 %v2575
          %v2615 = vunpack.c.l.b16 %v2576
          %v2616 = vunpack.c.l.b16 %v2577
          %v2617 = vunpack.c.l.b16 %v2578
          %v2618 = vpack.c.b16 %v2603, %v2602
          %v2619 = vpack.c.b16 %v2605, %v2604
          %v2620 = vpack.c.b16 %v2607, %v2606
          %v2621 = vpack.c.b16 %v2609, %v2608
          %v2622 = vpack.c.b16 %v2611, %v2610
          %v2623 = vpack.c.b16 %v2613, %v2612
          %v2624 = vpack.c.b16 %v2615, %v2614
          %v2625 = vpack.c.b16 %v2617, %v2616
          %2634 = vmatprep.subr.bf16.mxu0 0
          %2635 = vmatpush1.bf16.msra.mxu0 %v2618
          %2636 = vmatprep.subr.bf16.mxu0 0
          %2637 = vmatpush1.bf16.msra.mxu0 %v2619
          %2638 = vmatprep.subr.bf16.mxu0 0
          %2639 = vmatpush1.bf16.msra.mxu0 %v2620
          %2640 = vmatprep.subr.bf16.mxu0 0
          %2641 = vmatpush1.bf16.msra.mxu0 %v2621
          %2642 = vmatprep.subr.bf16.mxu0 0
          %2643 = vmatpush1.bf16.msra.mxu0 %v2622
          %2644 = vmatprep.subr.bf16.mxu0 0
          %2645 = vmatpush1.bf16.msra.mxu0 %v2623
          %2646 = vmatprep.subr.bf16.mxu0 0
          %2647 = vmatpush1.bf16.msra.mxu0 %v2624
          %2648 = vmatprep.subr.bf16.mxu0 0
          %2649 = vmatpush1.bf16.msra.mxu0 %v2625
          %2650 = vmatprep.subr.bf16.mxu0 0
          %2651 = vmatpush1.bf16.msra.mxu0 0
          %2652 = vmatprep.subr.bf16.mxu0 0
          %2653 = vmatpush1.bf16.msra.mxu0 0
          %2654 = vmatprep.subr.bf16.mxu0 0
          %2655 = vmatpush1.bf16.msra.mxu0 0
          %2656 = vmatprep.subr.bf16.mxu0 0
          %2657 = vmatpush1.bf16.msra.mxu0 0
          %2658 = vmatprep.subr.bf16.mxu0 0
          %2659 = vmatpush1.bf16.msra.mxu0 0
          %2660 = vmatprep.subr.bf16.mxu0 0
          %2661 = vmatpush1.bf16.msra.mxu0 0
          %2662 = vmatprep.subr.bf16.mxu0 0
          %2663 = vmatpush1.bf16.msra.mxu0 0
          %2664 = vmatprep.subr.bf16.mxu0 0
          %2665 = vmatpush1.bf16.msra.mxu0 0
          %2666 = vmatprep.mubr.bf16.mxu0 0
          %2667 = vmatmul.mubr.bf16.gmra.mrb[0].mxu0 %v2562
          %v2668 = vpop.f32.mrb[0].mxu0
          %v2669 = vadd.f32 %v2584, %v2668
          %v2670 = vpop.f32.mrb[0].mxu0
          %v2671 = vpop.f32.mrb[0].mxu0
          %v2672 = vpop.f32.mrb[0].mxu0
          %2673 = vdwg.mxu0
          %2674 = vst [vmem:[%s11] sm:$0xff] %v2669
        $region96: #{discriminator_forward.1} parent=63 // pred_fallthru
          _
        // Predicated region
        $region97: #{discriminator_forward.1} parent=63 // pred_check
          %p2675 = pneg %p275
        $region98: #{discriminator_forward.1} parent=63 // pred_check_branch
          %2677 = sbr.rel (%p2675) target = $region100
        $region99: #{discriminator_forward.1} parent=63 // pred_region
          _
        $region100: #{discriminator_forward.1} parent=63 // pred_fallthru
          _
        // Predicated region
        $region101: #{discriminator_forward.1} parent=63 // pred_check
          %p2678 = pneg %p275
        $region102: #{discriminator_forward.1} parent=63 // pred_check_branch
          %2680 = sbr.rel (%p2678) target = $region104
        $region103: #{discriminator_forward.1} parent=63 // pred_region
          _
        $region104: #{discriminator_forward.1} parent=63 // pred_fallthru
          _
      $region64: #{discriminator_forward.1} parent=5 // pred_fallthru
        _
      %p2681 = scmp.le.s32.totalorder 2, %s21
      // Predicated region
      $region105: #{discriminator_forward.1} parent=5 // pred_check
        %p2682 = pneg %p2681
      $region106: #{discriminator_forward.1} parent=5 // pred_check_branch
        %2684 = sbr.rel (%p2682) target = $region108
      $region107: #{discriminator_forward.1} parent=5 // pred_region
        %s2685 = ssub.s32 %s21, 2
      $region108: #{discriminator_forward.1} parent=5 // pred_fallthru
        _
    $region6: #{discriminator_forward.1} parent=1 // loop_footer
      %s25 = sadd.s32 1, %s21
    $region7: #{discriminator_forward.1} parent=1 // loop_footer_branch
      %20 = sbr.rel target = $region3
    $region8: #{discriminator_forward.1} parent=1 // loop_exit
      _
    %2686 = vsyncpa [#allocation5], 1
    %s2687 = scalar_lea.sflag [#allocation5], 1
    %2688 = vsyncpa %s2687, 1
    %2689 = vsyncpa [#allocation7], 1
    %2690 = vsyncpa [#allocation10], 1
    %2691 = vsyncpa [#allocation13], 1

</llo_original>
